<compile_context>
chip_gen: v5e
topology: v5e:2x2
jax: 0.10.0
libtpu: 0.0.40
codegen_flags: <defaults>
</compile_context>

<pallas_src>
import functools
import math

import jax
import jax.numpy as jnp
from jax.experimental import pallas as pl
from jax.experimental.pallas import tpu as pltpu


def _flash_attn_kernel(qi_tab, ki_tab, q_ref, k_ref, v_ref, o_ref,
                       m_scr, l_scr, acc_scr, *,
                       scale, heads, head_dim, packed, matmul_dtype):
    """One (batch, head-group, step) grid point of causal flash attention.

    q_ref/k_ref/v_ref/o_ref: (blk, heads*head_dim) if packed
                             else (blk, heads, head_dim).
    Scratch (persists across the step axis):
      m_scr, l_scr: (heads, blk, 1) f32        running max / denominator
      acc_scr:      (heads, blk, head_dim) f32 output accumulator
    """
    step = pl.program_id(2)
    qi = qi_tab[step]
    ki = ki_tab[step]

    def _head(ref, h):
        if packed:
            return ref[:, h * head_dim:(h + 1) * head_dim]
        return ref[:, h, :]

    @pl.when(ki == 0)
    def _init():
        m_scr[...] = jnp.full_like(m_scr, -jnp.inf)
        l_scr[...] = jnp.zeros_like(l_scr)
        acc_scr[...] = jnp.zeros_like(acc_scr)

    def _update(apply_mask):
        for h in range(heads):
            q = _head(q_ref, h) * scale      # fold softmax scale into q tile
            k = _head(k_ref, h)
            v = _head(v_ref, h)
            if matmul_dtype is not None:
                q = q.astype(matmul_dtype)
                k = k.astype(matmul_dtype)
            # q @ k^T contracting D on both operands (no k transpose), f32 acc.
            s = jax.lax.dot_general(q, k, (((1,), (1,)), ((), ())),
                                    preferred_element_type=jnp.float32)
            if apply_mask:
                # Diagonal block only (square tiles, qi == ki): additive -1e4
                # strictly above the diagonal, faithful to the PyTorch mask.
                row = jax.lax.broadcasted_iota(jnp.int32, s.shape, 0)
                col = jax.lax.broadcasted_iota(jnp.int32, s.shape, 1)
                s = s + jnp.where(col > row, jnp.float32(-10000.0),
                                  jnp.float32(0.0))

            # Online softmax update; statistics stay in float32.
            m_prev = m_scr[h]
            m_new = jnp.maximum(m_prev, jnp.max(s, axis=-1, keepdims=True))
            alpha = jnp.exp(m_prev - m_new)
            p = jnp.exp(s - m_new)
            l_scr[h] = alpha * l_scr[h] + jnp.sum(p, axis=-1, keepdims=True)
            pv_dtype = matmul_dtype if matmul_dtype is not None else v.dtype
            acc_scr[h] = alpha * acc_scr[h] + jax.lax.dot_general(
                p.astype(pv_dtype), v.astype(pv_dtype),
                (((1,), (0,)), ((), ())),
                preferred_element_type=jnp.float32)
            m_scr[h] = m_new

    # Off-diagonal blocks never need the in-block mask.
    @pl.when(ki < qi)
    def _off_diag():
        _update(apply_mask=False)

    # Diagonal block = masked update + finalize; under the triangular schedule
    # it is always the last contributor to this q row.
    @pl.when(ki == qi)
    def _diag_and_finalize():
        _update(apply_mask=True)
        for h in range(heads):
            l = l_scr[h]
            # EUP approximate reciprocal + one Newton step: divide stays off
            # the VALU yet keeps ~f32 accuracy for the final normalisation.
            r = pl.reciprocal(l, approx=True)
            r = r * (2.0 - l * r)
            out_h = (acc_scr[h] * r).astype(o_ref.dtype)
            if packed:
                o_ref[:, h * head_dim:(h + 1) * head_dim] = out_h
            else:
                o_ref[:, h, :] = out_h


def self_attention(qk, v, *, matmul_dtype=None):
    """Causal multihead attention. qk: (B,S,2,H,D), v: (B,S,H,D) -> (B,S,H,D).

    matmul_dtype: optional dtype (e.g. jnp.bfloat16) for the two matmuls; the
    softmax statistics and accumulator always stay float32.
    """
    B, S, two, H, D = qk.shape
    assert two == 2
    assert v.shape == (B, S, H, D)
    scale = 1.0 / math.sqrt(D)

    # --- tile size along the sequence axis --------------------------------
    # Square 256 tiles keep QK^T's N at the 256-wide MXU width while leaving a
    # large VMEM margin on every generation (incl. v7x's 64 MiB/TC).  The
    # triangular schedule removes all dead kv steps, so larger / asymmetric kv
    # tiles are not needed.
    blk = S
    for cand in (256, 128, 64, 32, 16, 8):
        if S % cand == 0:
            blk = cand
            break
    # TODO(synk): pad + tail-mask sequence lengths with no multiple-of-8
    # divisor <= 256 instead of falling back to a single full-S block.
    nblk = S // blk

    # --- flattened lower-triangular (qi, ki) schedule ----------------------
    pairs = [(qi, ki) for qi in range(nblk) for ki in range(qi + 1)]
    qi_tab = jnp.asarray([p[0] for p in pairs], dtype=jnp.int32)
    ki_tab = jnp.asarray([p[1] for p in pairs], dtype=jnp.int32)
    n_steps = len(pairs)

    # --- head packing -------------------------------------------------------
    # Pack heads until tiles are >=128 lanes wide (lane-dense stores, fewer
    # grid steps).  The packed path needs hp*D to be a lane-tile multiple; if
    # impossible, fall back to a 5-D BlockSpec carrying all H heads per step
    # (still transpose-free, just not lane-dense).
    hp = 1
    while hp * D < 128 and H % (hp * 2) == 0:
        hp *= 2
    packed = (hp * D) % 128 == 0

    if packed:
        heads_per_step = hp
        groups = H // hp
        width = hp * D
        qk_in = qk.reshape(B, S, 2 * H * D)   # free reshape (trailing dims)
        v_in = v.reshape(B, S, H * D)         # free reshape
        q_spec = pl.BlockSpec((None, blk, width),
                              lambda b, g, s, qt, kt: (b, qt[s], g))
        k_spec = pl.BlockSpec((None, blk, width),
                              lambda b, g, s, qt, kt: (b, kt[s], groups + g))
        v_spec = pl.BlockSpec((None, blk, width),
                              lambda b, g, s, qt, kt: (b, kt[s], g))
        o_spec = pl.BlockSpec((None, blk, width),
                              lambda b, g, s, qt, kt: (b, qt[s], g))
        out_shape = jax.ShapeDtypeStruct((B, S, H * D), v.dtype)
    else:
        heads_per_step = H
        groups = 1
        qk_in = qk
        v_in = v
        q_spec = pl.BlockSpec((None, blk, None, H, D),
                              lambda b, g, s, qt, kt: (b, qt[s], 0, 0, 0))
        k_spec = pl.BlockSpec((None, blk, None, H, D),
                              lambda b, g, s, qt, kt: (b, kt[s], 1, 0, 0))
        v_spec = pl.BlockSpec((None, blk, H, D),
                              lambda b, g, s, qt, kt: (b, kt[s], 0, 0))
        o_spec = pl.BlockSpec((None, blk, H, D),
                              lambda b, g, s, qt, kt: (b, qt[s], 0, 0))
        out_shape = jax.ShapeDtypeStruct((B, S, H, D), v.dtype)

    itemsize = jnp.dtype(v.dtype).itemsize
    cost = pl.CostEstimate(
        flops=2 * B * H * S * S * D,            # causal ~= half of 4*B*H*S^2*D
        transcendentals=B * H * S * S // 2,     # exp
        bytes_accessed=(qk.size + 2 * v.size) * itemsize,
    )

    kernel = functools.partial(
        _flash_attn_kernel, scale=scale, heads=heads_per_step, head_dim=D,
        packed=packed, matmul_dtype=matmul_dtype)

    out = pl.pallas_call(
        kernel,
        out_shape=out_shape,
        grid_spec=pltpu.PrefetchScalarGridSpec(
            num_scalar_prefetch=2,              # qi_tab, ki_tab -> SMEM
            grid=(B, groups, n_steps),
            in_specs=[q_spec, k_spec, v_spec],
            out_specs=o_spec,
            scratch_shapes=[
                pltpu.VMEM((heads_per_step, blk, 1), jnp.float32),   # m
                pltpu.VMEM((heads_per_step, blk, 1), jnp.float32),   # l
                pltpu.VMEM((heads_per_step, blk, D), jnp.float32),   # acc
            ],
        ),
        compiler_params=pltpu.CompilerParams(
            # (B, head-group) are independent -> megacore sharding on v7x; the
            # flattened causal step axis carries the online-softmax state.
            dimension_semantics=("parallel", "parallel", "arbitrary"),
            # ~6 MiB actually used with blk=256; 32 MiB is safe on v5e/v6e
            # (128 MiB VMEM) and on v7x (64 MiB per TensorCore) alike.
            vmem_limit_bytes=32 * 1024 * 1024,
        ),
        cost_estimate=cost,
    )(qi_tab, ki_tab, qk_in, qk_in, v_in)

    if packed:
        out = out.reshape(B, S, H, D)           # free reshape back
    return out


def _reference(qk, v):
    q = qk[:, :, 0]
    k = qk[:, :, 1]
    D = q.shape[-1]
    scale = 1.0 / math.sqrt(D)
    scores = jnp.einsum('bthd,bshd->bhts', q, k * scale)
    S = qk.shape[1]
    mask = jnp.triu(jnp.full((S, S), -10000.0, dtype=scores.dtype), 1)
    scores = scores + mask
    attn = jax.nn.softmax(scores, axis=-1).astype(v.dtype)
    return jnp.einsum('bhts,bshd->bthd', attn, v)


if __name__ == "__main__":
    key = jax.random.PRNGKey(0)
    k1, k2, k3, k4, k5, k6 = jax.random.split(key, 6)

    # Small shape implied by the module interface (packed path: 4 heads of
    # D=32 per 128-lane tile, single 8-row block).
    B, S, H, D = 2, 8, 4, 32
    qk = jax.random.normal(k1, (B, S, 2, H, D), dtype=jnp.float32)
    v = jax.random.normal(k2, (B, S, H, D), dtype=jnp.float32)
    out = jax.block_until_ready(self_attention(qk, v))
    ref = _reference(qk, v)
    assert out.shape == (B, S, H, D)
    assert jnp.allclose(out, ref, atol=1e-3, rtol=1e-3), "mismatch (small)"

    # Multi-block path: exercises the triangular schedule / online softmax
    # (blk=256 -> 2 q rows, 3 grid steps) with 2-head packing at D=64.
    B2, S2, H2, D2 = 1, 512, 2, 64
    qk2 = jax.random.normal(k3, (B2, S2, 2, H2, D2), dtype=jnp.float32)
    v2 = jax.random.normal(k4, (B2, S2, H2, D2), dtype=jnp.float32)
    out2 = jax.block_until_ready(self_attention(qk2, v2))
    ref2 = _reference(qk2, v2)
    assert jnp.allclose(out2, ref2, atol=1e-3, rtol=1e-3), "mismatch (tiled)"

    # Fallback (unpacked, transpose-free 5-D BlockSpec) path: hp*D not a
    # lane-tile multiple (H=3, D=32).
    B3, S3, H3, D3 = 1, 256, 3, 32
    qk3 = jax.random.normal(k5, (B3, S3, 2, H3, D3), dtype=jnp.float32)
    v3 = jax.random.normal(k6, (B3, S3, H3, D3), dtype=jnp.float32)
    out3 = jax.block_until_ready(self_attention(qk3, v3))
    ref3 = _reference(qk3, v3)
    assert jnp.allclose(out3, ref3, atol=1e-3, rtol=1e-3), "mismatch (fallback)"

    print("KERNEL_OK")
</pallas_src>

<mosaic_0001>
module attributes {stable_mosaic.version = 11 : i64} {
  func.func @_flash_attn_kernel(%arg0: i32, %arg1: i32, %arg2: i32, %arg3: memref<1xi32, #tpu.memory_space<smem>>, %arg4: memref<1xi32, #tpu.memory_space<smem>>, %arg5: memref<1x8x128xf32, #tpu.memory_space<vmem>>, %arg6: memref<1x8x128xf32, #tpu.memory_space<vmem>>, %arg7: memref<1x8x128xf32, #tpu.memory_space<vmem>>, %arg8: memref<1x8x128xf32, #tpu.memory_space<vmem>>, %arg9: memref<4x8x1xf32, #tpu.memory_space<vmem>>, %arg10: memref<4x8x1xf32, #tpu.memory_space<vmem>>, %arg11: memref<4x8x32xf32, #tpu.memory_space<vmem>>) attributes {dimension_semantics = [#tpu.dimension_semantics<parallel>, #tpu.dimension_semantics<parallel>, #tpu.dimension_semantics<arbitrary>], iteration_bounds = array<i64: 2, 1, 1>, scalar_prefetch = 2 : i64, scratch_operands = 3 : i64, tpu.core_type = #tpu.core_type<tc>, window_params = [{transform_indices = @transform_0, window_bounds = array<i64: 1, 8, 128>}, {transform_indices = @transform_1, window_bounds = array<i64: 1, 8, 128>}, {transform_indices = @transform_2, window_bounds = array<i64: 1, 8, 128>}, {transform_indices = @transform_3, window_bounds = array<i64: 1, 8, 128>}]} {
    %0 = arith.index_cast %arg2 : i32 to index
    %1 = memref.load %arg3[%0] : memref<1xi32, #tpu.memory_space<smem>>
    %2 = arith.index_cast %arg2 : i32 to index
    %3 = memref.load %arg4[%2] : memref<1xi32, #tpu.memory_space<smem>>
    %c0_i32 = arith.constant 0 : i32
    %4 = arith.cmpi eq, %3, %c0_i32 : i32
    %5 = arith.extui %4 : i1 to i32
    %c0_i32_0 = arith.constant 0 : i32
    %6 = arith.cmpi ne, %5, %c0_i32_0 : i32
    scf.if %6 {
      %cst = arith.constant 0xFF800000 : f32
      %13 = vector.broadcast %cst : f32 to vector<4x8x1xf32>
      %c0 = arith.constant 0 : index
      %c0_3 = arith.constant 0 : index
      %c0_4 = arith.constant 0 : index
      %14 = vector.load %arg9[%c0, %c0_3, %c0_4] : memref<4x8x1xf32, #tpu.memory_space<vmem>>, vector<4x8x1xf32>
      tpu.vector_store %arg9[%c0, %c0_3, %c0_4], %13 {strides = array<i32>} : memref<4x8x1xf32, #tpu.memory_space<vmem>>, vector<4x8x1xf32>,
      %cst_5 = arith.constant 0.000000e+00 : f32
      %15 = vector.broadcast %cst_5 : f32 to vector<4x8x1xf32>
      %c0_6 = arith.constant 0 : index
      %c0_7 = arith.constant 0 : index
      %c0_8 = arith.constant 0 : index
      %16 = vector.load %arg10[%c0_6, %c0_7, %c0_8] : memref<4x8x1xf32, #tpu.memory_space<vmem>>, vector<4x8x1xf32>
      tpu.vector_store %arg10[%c0_6, %c0_7, %c0_8], %15 {strides = array<i32>} : memref<4x8x1xf32, #tpu.memory_space<vmem>>, vector<4x8x1xf32>,
      %cst_9 = arith.constant 0.000000e+00 : f32
      %17 = vector.broadcast %cst_9 : f32 to vector<4x8x32xf32>
      %c0_10 = arith.constant 0 : index
      %c0_11 = arith.constant 0 : index
      %c0_12 = arith.constant 0 : index
      %18 = vector.load %arg11[%c0_10, %c0_11, %c0_12] : memref<4x8x32xf32, #tpu.memory_space<vmem>>, vector<4x8x32xf32>
      tpu.vector_store %arg11[%c0_10, %c0_11, %c0_12], %17 {strides = array<i32>} : memref<4x8x32xf32, #tpu.memory_space<vmem>>, vector<4x8x32xf32>,
    } else {
    }
    %7 = arith.cmpi slt, %3, %1 : i32
    %8 = arith.extui %7 : i1 to i32
    %c0_i32_1 = arith.constant 0 : i32
    %9 = arith.cmpi ne, %8, %c0_i32_1 : i32
    scf.if %9 {
      %c0 = arith.constant 0 : index
      %c0_3 = arith.constant 0 : index
      %c0_4 = arith.constant 0 : index
      %13 = vector.load %arg5[%c0, %c0_3, %c0_4] : memref<1x8x128xf32, #tpu.memory_space<vmem>>, vector<1x8x32xf32>
      %14 = vector.shape_cast %13 : vector<1x8x32xf32> to vector<8x32xf32>
      %cst = arith.constant 0.176776692 : f32
      %15 = vector.broadcast %cst : f32 to vector<8x32xf32>
      %16 = arith.mulf %14, %15 : vector<8x32xf32>
      %c0_5 = arith.constant 0 : index
      %c0_6 = arith.constant 0 : index
      %c0_7 = arith.constant 0 : index
      %17 = vector.load %arg6[%c0_5, %c0_6, %c0_7] : memref<1x8x128xf32, #tpu.memory_space<vmem>>, vector<1x8x32xf32>
      %18 = vector.shape_cast %17 : vector<1x8x32xf32> to vector<8x32xf32>
      %c0_8 = arith.constant 0 : index
      %c0_9 = arith.constant 0 : index
      %c0_10 = arith.constant 0 : index
      %19 = vector.load %arg7[%c0_8, %c0_9, %c0_10] : memref<1x8x128xf32, #tpu.memory_space<vmem>>, vector<1x8x32xf32>
      %20 = vector.shape_cast %19 : vector<1x8x32xf32> to vector<8x32xf32>
      %cst_11 = arith.constant dense<0.000000e+00> : vector<8x8xf32>
      %21 = tpu.matmul %16, %18, %cst_11 {dimension_numbers = #tpu.dot_dimension_numbers<[1], [1], [0], [0], [0, 0, 1, 0], [], []>} : vector<8x32xf32>, vector<8x32xf32>, vector<8x8xf32> -> vector<8x8xf32>
      %c0_12 = arith.constant 0 : index
      %c0_13 = arith.constant 0 : index
      %c0_14 = arith.constant 0 : index
      %22 = vector.load %arg9[%c0_12, %c0_13, %c0_14] : memref<4x8x1xf32, #tpu.memory_space<vmem>>, vector<1x8x1xf32>
      %23 = vector.shape_cast %22 : vector<1x8x1xf32> to vector<8x1xf32>
      %cst_15 = arith.constant dense<0xFF800000> : vector<8xf32>
      %24 = vector.multi_reduction <maximumf>, %21, %cst_15 [1] : vector<8x8xf32> to vector<8xf32>
      %25 = vector.shape_cast %24 : vector<8xf32> to vector<8x1xf32>
      %26 = arith.maximumf %23, %25 : vector<8x1xf32>
      %27 = arith.subf %23, %26 : vector<8x1xf32>
      %28 = math.exp %27 : vector<8x1xf32>
      %29 = vector.broadcast %26 : vector<8x1xf32> to vector<8x8xf32>
      %30 = arith.subf %21, %29 : vector<8x8xf32>
      %31 = math.exp %30 : vector<8x8xf32>
      %c0_16 = arith.constant 0 : index
      %c0_17 = arith.constant 0 : index
      %c0_18 = arith.constant 0 : index
      %32 = vector.load %arg10[%c0_16, %c0_17, %c0_18] : memref<4x8x1xf32, #tpu.memory_space<vmem>>, vector<1x8x1xf32>
      %33 = vector.shape_cast %32 : vector<1x8x1xf32> to vector<8x1xf32>
      %34 = arith.mulf %28, %33 : vector<8x1xf32>
      %cst_19 = arith.constant dense<0.000000e+00> : vector<8xf32>
      %35 = vector.multi_reduction <add>, %31, %cst_19 [1] : vector<8x8xf32> to vector<8xf32>
      %36 = vector.shape_cast %35 : vector<8xf32> to vector<8x1xf32>
      %37 = arith.addf %34, %36 : vector<8x1xf32>
      %c0_20 = arith.constant 0 : index
      %c0_21 = arith.constant 0 : index
      %c0_22 = arith.constant 0 : index
      %38 = vector.load %arg10[%c0_20, %c0_21, %c0_22] : memref<4x8x1xf32, #tpu.memory_space<vmem>>, vector<1x8x1xf32>
      %39 = vector.shape_cast %38 : vector<1x8x1xf32> to vector<8x1xf32>
      %40 = vector.shape_cast %37 : vector<8x1xf32> to vector<1x8x1xf32>
      tpu.vector_store %arg10[%c0_20, %c0_21, %c0_22], %40 {strides = array<i32>} : memref<4x8x1xf32, #tpu.memory_space<vmem>>, vector<1x8x1xf32>,
      %c0_23 = arith.constant 0 : index
      %c0_24 = arith.constant 0 : index
      %c0_25 = arith.constant 0 : index
      %41 = vector.load %arg11[%c0_23, %c0_24, %c0_25] : memref<4x8x32xf32, #tpu.memory_space<vmem>>, vector<1x8x32xf32>
      %42 = vector.shape_cast %41 : vector<1x8x32xf32> to vector<8x32xf32>
      %43 = vector.broadcast %28 : vector<8x1xf32> to vector<8x32xf32>
      %44 = arith.mulf %43, %42 : vector<8x32xf32>
      %cst_26 = arith.constant dense<0.000000e+00> : vector<8x32xf32>
      %45 = tpu.matmul %31, %20, %cst_26 {dimension_numbers = #tpu.dot_dimension_numbers<[1], [0], [0], [1], [0, 0, 1, 1], [], []>} : vector<8x8xf32>, vector<8x32xf32>, vector<8x32xf32> -> vector<8x32xf32>
      %46 = arith.addf %44, %45 : vector<8x32xf32>
      %c0_27 = arith.constant 0 : index
      %c0_28 = arith.constant 0 : index
      %c0_29 = arith.constant 0 : index
      %47 = vector.load %arg11[%c0_27, %c0_28, %c0_29] : memref<4x8x32xf32, #tpu.memory_space<vmem>>, vector<1x8x32xf32>
      %48 = vector.shape_cast %47 : vector<1x8x32xf32> to vector<8x32xf32>
      %49 = vector.shape_cast %46 : vector<8x32xf32> to vector<1x8x32xf32>
      tpu.vector_store %arg11[%c0_27, %c0_28, %c0_29], %49 {strides = array<i32>} : memref<4x8x32xf32, #tpu.memory_space<vmem>>, vector<1x8x32xf32>,
      %c0_30 = arith.constant 0 : index
      %c0_31 = arith.constant 0 : index
      %c0_32 = arith.constant 0 : index
      %50 = vector.load %arg9[%c0_30, %c0_31, %c0_32] : memref<4x8x1xf32, #tpu.memory_space<vmem>>, vector<1x8x1xf32>
      %51 = vector.shape_cast %50 : vector<1x8x1xf32> to vector<8x1xf32>
      %52 = vector.shape_cast %26 : vector<8x1xf32> to vector<1x8x1xf32>
      tpu.vector_store %arg9[%c0_30, %c0_31, %c0_32], %52 {strides = array<i32>} : memref<4x8x1xf32, #tpu.memory_space<vmem>>, vector<1x8x1xf32>,
      %c0_33 = arith.constant 0 : index
      %c0_34 = arith.constant 0 : index
      %c32 = arith.constant 32 : index
      %53 = vector.load %arg5[%c0_33, %c0_34, %c32] : memref<1x8x128xf32, #tpu.memory_space<vmem>>, vector<1x8x32xf32>
      %54 = vector.shape_cast %53 : vector<1x8x32xf32> to vector<8x32xf32>
      %cst_35 = arith.constant 0.176776692 : f32
      %55 = vector.broadcast %cst_35 : f32 to vector<8x32xf32>
      %56 = arith.mulf %54, %55 : vector<8x32xf32>
      %c0_36 = arith.constant 0 : index
      %c0_37 = arith.constant 0 : index
      %c32_38 = arith.constant 32 : index
      %57 = vector.load %arg6[%c0_36, %c0_37, %c32_38] : memref<1x8x128xf32, #tpu.memory_space<vmem>>, vector<1x8x32xf32>
      %58 = vector.shape_cast %57 : vector<1x8x32xf32> to vector<8x32xf32>
      %c0_39 = arith.constant 0 : index
      %c0_40 = arith.constant 0 : index
      %c32_41 = arith.constant 32 : index
      %59 = vector.load %arg7[%c0_39, %c0_40, %c32_41] : memref<1x8x128xf32, #tpu.memory_space<vmem>>, vector<1x8x32xf32>
      %60 = vector.shape_cast %59 : vector<1x8x32xf32> to vector<8x32xf32>
      %cst_42 = arith.constant dense<0.000000e+00> : vector<8x8xf32>
      %61 = tpu.matmul %56, %58, %cst_42 {dimension_numbers = #tpu.dot_dimension_numbers<[1], [1], [0], [0], [0, 0, 1, 0], [], []>} : vector<8x32xf32>, vector<8x32xf32>, vector<8x8xf32> -> vector<8x8xf32>
      %c1 = arith.constant 1 : index
      %c0_43 = arith.constant 0 : index
      %c0_44 = arith.constant 0 : index
      %62 = vector.load %arg9[%c1, %c0_43, %c0_44] : memref<4x8x1xf32, #tpu.memory_space<vmem>>, vector<1x8x1xf32>
      %63 = vector.shape_cast %62 : vector<1x8x1xf32> to vector<8x1xf32>
      %cst_45 = arith.constant dense<0xFF800000> : vector<8xf32>
      %64 = vector.multi_reduction <maximumf>, %61, %cst_45 [1] : vector<8x8xf32> to vector<8xf32>
      %65 = vector.shape_cast %64 : vector<8xf32> to vector<8x1xf32>
      %66 = arith.maximumf %63, %65 : vector<8x1xf32>
      %67 = arith.subf %63, %66 : vector<8x1xf32>
      %68 = math.exp %67 : vector<8x1xf32>
      %69 = vector.broadcast %66 : vector<8x1xf32> to vector<8x8xf32>
      %70 = arith.subf %61, %69 : vector<8x8xf32>
      %71 = math.exp %70 : vector<8x8xf32>
      %c1_46 = arith.constant 1 : index
      %c0_47 = arith.constant 0 : index
      %c0_48 = arith.constant 0 : index
      %72 = vector.load %arg10[%c1_46, %c0_47, %c0_48] : memref<4x8x1xf32, #tpu.memory_space<vmem>>, vector<1x8x1xf32>
      %73 = vector.shape_cast %72 : vector<1x8x1xf32> to vector<8x1xf32>
      %74 = arith.mulf %68, %73 : vector<8x1xf32>
      %cst_49 = arith.constant dense<0.000000e+00> : vector<8xf32>
      %75 = vector.multi_reduction <add>, %71, %cst_49 [1] : vector<8x8xf32> to vector<8xf32>
      %76 = vector.shape_cast %75 : vector<8xf32> to vector<8x1xf32>
      %77 = arith.addf %74, %76 : vector<8x1xf32>
      %c1_50 = arith.constant 1 : index
      %c0_51 = arith.constant 0 : index
      %c0_52 = arith.constant 0 : index
      %78 = vector.load %arg10[%c1_50, %c0_51, %c0_52] : memref<4x8x1xf32, #tpu.memory_space<vmem>>, vector<1x8x1xf32>
      %79 = vector.shape_cast %78 : vector<1x8x1xf32> to vector<8x1xf32>
      %80 = vector.shape_cast %77 : vector<8x1xf32> to vector<1x8x1xf32>
      tpu.vector_store %arg10[%c1_50, %c0_51, %c0_52], %80 {strides = array<i32>} : memref<4x8x1xf32, #tpu.memory_space<vmem>>, vector<1x8x1xf32>,
      %c1_53 = arith.constant 1 : index
      %c0_54 = arith.constant 0 : index
      %c0_55 = arith.constant 0 : index
      %81 = vector.load %arg11[%c1_53, %c0_54, %c0_55] : memref<4x8x32xf32, #tpu.memory_space<vmem>>, vector<1x8x32xf32>
      %82 = vector.shape_cast %81 : vector<1x8x32xf32> to vector<8x32xf32>
      %83 = vector.broadcast %68 : vector<8x1xf32> to vector<8x32xf32>
      %84 = arith.mulf %83, %82 : vector<8x32xf32>
      %cst_56 = arith.constant dense<0.000000e+00> : vector<8x32xf32>
      %85 = tpu.matmul %71, %60, %cst_56 {dimension_numbers = #tpu.dot_dimension_numbers<[1], [0], [0], [1], [0, 0, 1, 1], [], []>} : vector<8x8xf32>, vector<8x32xf32>, vector<8x32xf32> -> vector<8x32xf32>
      %86 = arith.addf %84, %85 : vector<8x32xf32>
      %c1_57 = arith.constant 1 : index
      %c0_58 = arith.constant 0 : index
      %c0_59 = arith.constant 0 : index
      %87 = vector.load %arg11[%c1_57, %c0_58, %c0_59] : memref<4x8x32xf32, #tpu.memory_space<vmem>>, vector<1x8x32xf32>
      %88 = vector.shape_cast %87 : vector<1x8x32xf32> to vector<8x32xf32>
      %89 = vector.shape_cast %86 : vector<8x32xf32> to vector<1x8x32xf32>
      tpu.vector_store %arg11[%c1_57, %c0_58, %c0_59], %89 {strides = array<i32>} : memref<4x8x32xf32, #tpu.memory_space<vmem>>, vector<1x8x32xf32>,
      %c1_60 = arith.constant 1 : index
      %c0_61 = arith.constant 0 : index
      %c0_62 = arith.constant 0 : index
      %90 = vector.load %arg9[%c1_60, %c0_61, %c0_62] : memref<4x8x1xf32, #tpu.memory_space<vmem>>, vector<1x8x1xf32>
      %91 = vector.shape_cast %90 : vector<1x8x1xf32> to vector<8x1xf32>
      %92 = vector.shape_cast %66 : vector<8x1xf32> to vector<1x8x1xf32>
      tpu.vector_store %arg9[%c1_60, %c0_61, %c0_62], %92 {strides = array<i32>} : memref<4x8x1xf32, #tpu.memory_space<vmem>>, vector<1x8x1xf32>,
      %c0_63 = arith.constant 0 : index
      %c0_64 = arith.constant 0 : index
      %c64 = arith.constant 64 : index
      %93 = vector.load %arg5[%c0_63, %c0_64, %c64] : memref<1x8x128xf32, #tpu.memory_space<vmem>>, vector<1x8x32xf32>
      %94 = vector.shape_cast %93 : vector<1x8x32xf32> to vector<8x32xf32>
      %cst_65 = arith.constant 0.176776692 : f32
      %95 = vector.broadcast %cst_65 : f32 to vector<8x32xf32>
      %96 = arith.mulf %94, %95 : vector<8x32xf32>
      %c0_66 = arith.constant 0 : index
      %c0_67 = arith.constant 0 : index
      %c64_68 = arith.constant 64 : index
      %97 = vector.load %arg6[%c0_66, %c0_67, %c64_68] : memref<1x8x128xf32, #tpu.memory_space<vmem>>, vector<1x8x32xf32>
      %98 = vector.shape_cast %97 : vector<1x8x32xf32> to vector<8x32xf32>
      %c0_69 = arith.constant 0 : index
      %c0_70 = arith.constant 0 : index
      %c64_71 = arith.constant 64 : index
      %99 = vector.load %arg7[%c0_69, %c0_70, %c64_71] : memref<1x8x128xf32, #tpu.memory_space<vmem>>, vector<1x8x32xf32>
      %100 = vector.shape_cast %99 : vector<1x8x32xf32> to vector<8x32xf32>
      %cst_72 = arith.constant dense<0.000000e+00> : vector<8x8xf32>
      %101 = tpu.matmul %96, %98, %cst_72 {dimension_numbers = #tpu.dot_dimension_numbers<[1], [1], [0], [0], [0, 0, 1, 0], [], []>} : vector<8x32xf32>, vector<8x32xf32>, vector<8x8xf32> -> vector<8x8xf32>
      %c2 = arith.constant 2 : index
      %c0_73 = arith.constant 0 : index
      %c0_74 = arith.constant 0 : index
      %102 = vector.load %arg9[%c2, %c0_73, %c0_74] : memref<4x8x1xf32, #tpu.memory_space<vmem>>, vector<1x8x1xf32>
      %103 = vector.shape_cast %102 : vector<1x8x1xf32> to vector<8x1xf32>
      %cst_75 = arith.constant dense<0xFF800000> : vector<8xf32>
      %104 = vector.multi_reduction <maximumf>, %101, %cst_75 [1] : vector<8x8xf32> to vector<8xf32>
      %105 = vector.shape_cast %104 : vector<8xf32> to vector<8x1xf32>
      %106 = arith.maximumf %103, %105 : vector<8x1xf32>
      %107 = arith.subf %103, %106 : vector<8x1xf32>
      %108 = math.exp %107 : vector<8x1xf32>
      %109 = vector.broadcast %106 : vector<8x1xf32> to vector<8x8xf32>
      %110 = arith.subf %101, %109 : vector<8x8xf32>
      %111 = math.exp %110 : vector<8x8xf32>
      %c2_76 = arith.constant 2 : index
      %c0_77 = arith.constant 0 : index
      %c0_78 = arith.constant 0 : index
      %112 = vector.load %arg10[%c2_76, %c0_77, %c0_78] : memref<4x8x1xf32, #tpu.memory_space<vmem>>, vector<1x8x1xf32>
      %113 = vector.shape_cast %112 : vector<1x8x1xf32> to vector<8x1xf32>
      %114 = arith.mulf %108, %113 : vector<8x1xf32>
      %cst_79 = arith.constant dense<0.000000e+00> : vector<8xf32>
      %115 = vector.multi_reduction <add>, %111, %cst_79 [1] : vector<8x8xf32> to vector<8xf32>
      %116 = vector.shape_cast %115 : vector<8xf32> to vector<8x1xf32>
      %117 = arith.addf %114, %116 : vector<8x1xf32>
      %c2_80 = arith.constant 2 : index
      %c0_81 = arith.constant 0 : index
      %c0_82 = arith.constant 0 : index
      %118 = vector.load %arg10[%c2_80, %c0_81, %c0_82] : memref<4x8x1xf32, #tpu.memory_space<vmem>>, vector<1x8x1xf32>
      %119 = vector.shape_cast %118 : vector<1x8x1xf32> to vector<8x1xf32>
      %120 = vector.shape_cast %117 : vector<8x1xf32> to vector<1x8x1xf32>
      tpu.vector_store %arg10[%c2_80, %c0_81, %c0_82], %120 {strides = array<i32>} : memref<4x8x1xf32, #tpu.memory_space<vmem>>, vector<1x8x1xf32>,
      %c2_83 = arith.constant 2 : index
      %c0_84 = arith.constant 0 : index
      %c0_85 = arith.constant 0 : index
      %121 = vector.load %arg11[%c2_83, %c0_84, %c0_85] : memref<4x8x32xf32, #tpu.memory_space<vmem>>, vector<1x8x32xf32>
      %122 = vector.shape_cast %121 : vector<1x8x32xf32> to vector<8x32xf32>
      %123 = vector.broadcast %108 : vector<8x1xf32> to vector<8x32xf32>
      %124 = arith.mulf %123, %122 : vector<8x32xf32>
      %cst_86 = arith.constant dense<0.000000e+00> : vector<8x32xf32>
      %125 = tpu.matmul %111, %100, %cst_86 {dimension_numbers = #tpu.dot_dimension_numbers<[1], [0], [0], [1], [0, 0, 1, 1], [], []>} : vector<8x8xf32>, vector<8x32xf32>, vector<8x32xf32> -> vector<8x32xf32>
      %126 = arith.addf %124, %125 : vector<8x32xf32>
      %c2_87 = arith.constant 2 : index
      %c0_88 = arith.constant 0 : index
      %c0_89 = arith.constant 0 : index
      %127 = vector.load %arg11[%c2_87, %c0_88, %c0_89] : memref<4x8x32xf32, #tpu.memory_space<vmem>>, vector<1x8x32xf32>
      %128 = vector.shape_cast %127 : vector<1x8x32xf32> to vector<8x32xf32>
      %129 = vector.shape_cast %126 : vector<8x32xf32> to vector<1x8x32xf32>
      tpu.vector_store %arg11[%c2_87, %c0_88, %c0_89], %129 {strides = array<i32>} : memref<4x8x32xf32, #tpu.memory_space<vmem>>, vector<1x8x32xf32>,
      %c2_90 = arith.constant 2 : index
      %c0_91 = arith.constant 0 : index
      %c0_92 = arith.constant 0 : index
      %130 = vector.load %arg9[%c2_90, %c0_91, %c0_92] : memref<4x8x1xf32, #tpu.memory_space<vmem>>, vector<1x8x1xf32>
      %131 = vector.shape_cast %130 : vector<1x8x1xf32> to vector<8x1xf32>
      %132 = vector.shape_cast %106 : vector<8x1xf32> to vector<1x8x1xf32>
      tpu.vector_store %arg9[%c2_90, %c0_91, %c0_92], %132 {strides = array<i32>} : memref<4x8x1xf32, #tpu.memory_space<vmem>>, vector<1x8x1xf32>,
      %c0_93 = arith.constant 0 : index
      %c0_94 = arith.constant 0 : index
      %c96 = arith.constant 96 : index
      %133 = vector.load %arg5[%c0_93, %c0_94, %c96] : memref<1x8x128xf32, #tpu.memory_space<vmem>>, vector<1x8x32xf32>
      %134 = vector.shape_cast %133 : vector<1x8x32xf32> to vector<8x32xf32>
      %cst_95 = arith.constant 0.176776692 : f32
      %135 = vector.broadcast %cst_95 : f32 to vector<8x32xf32>
      %136 = arith.mulf %134, %135 : vector<8x32xf32>
      %c0_96 = arith.constant 0 : index
      %c0_97 = arith.constant 0 : index
      %c96_98 = arith.constant 96 : index
      %137 = vector.load %arg6[%c0_96, %c0_97, %c96_98] : memref<1x8x128xf32, #tpu.memory_space<vmem>>, vector<1x8x32xf32>
      %138 = vector.shape_cast %137 : vector<1x8x32xf32> to vector<8x32xf32>
      %c0_99 = arith.constant 0 : index
      %c0_100 = arith.constant 0 : index
      %c96_101 = arith.constant 96 : index
      %139 = vector.load %arg7[%c0_99, %c0_100, %c96_101] : memref<1x8x128xf32, #tpu.memory_space<vmem>>, vector<1x8x32xf32>
      %140 = vector.shape_cast %139 : vector<1x8x32xf32> to vector<8x32xf32>
      %cst_102 = arith.constant dense<0.000000e+00> : vector<8x8xf32>
      %141 = tpu.matmul %136, %138, %cst_102 {dimension_numbers = #tpu.dot_dimension_numbers<[1], [1], [0], [0], [0, 0, 1, 0], [], []>} : vector<8x32xf32>, vector<8x32xf32>, vector<8x8xf32> -> vector<8x8xf32>
      %c3 = arith.constant 3 : index
      %c0_103 = arith.constant 0 : index
      %c0_104 = arith.constant 0 : index
      %142 = vector.load %arg9[%c3, %c0_103, %c0_104] : memref<4x8x1xf32, #tpu.memory_space<vmem>>, vector<1x8x1xf32>
      %143 = vector.shape_cast %142 : vector<1x8x1xf32> to vector<8x1xf32>
      %cst_105 = arith.constant dense<0xFF800000> : vector<8xf32>
      %144 = vector.multi_reduction <maximumf>, %141, %cst_105 [1] : vector<8x8xf32> to vector<8xf32>
      %145 = vector.shape_cast %144 : vector<8xf32> to vector<8x1xf32>
      %146 = arith.maximumf %143, %145 : vector<8x1xf32>
      %147 = arith.subf %143, %146 : vector<8x1xf32>
      %148 = math.exp %147 : vector<8x1xf32>
      %149 = vector.broadcast %146 : vector<8x1xf32> to vector<8x8xf32>
      %150 = arith.subf %141, %149 : vector<8x8xf32>
      %151 = math.exp %150 : vector<8x8xf32>
      %c3_106 = arith.constant 3 : index
      %c0_107 = arith.constant 0 : index
      %c0_108 = arith.constant 0 : index
      %152 = vector.load %arg10[%c3_106, %c0_107, %c0_108] : memref<4x8x1xf32, #tpu.memory_space<vmem>>, vector<1x8x1xf32>
      %153 = vector.shape_cast %152 : vector<1x8x1xf32> to vector<8x1xf32>
      %154 = arith.mulf %148, %153 : vector<8x1xf32>
      %cst_109 = arith.constant dense<0.000000e+00> : vector<8xf32>
      %155 = vector.multi_reduction <add>, %151, %cst_109 [1] : vector<8x8xf32> to vector<8xf32>
      %156 = vector.shape_cast %155 : vector<8xf32> to vector<8x1xf32>
      %157 = arith.addf %154, %156 : vector<8x1xf32>
      %c3_110 = arith.constant 3 : index
      %c0_111 = arith.constant 0 : index
      %c0_112 = arith.constant 0 : index
      %158 = vector.load %arg10[%c3_110, %c0_111, %c0_112] : memref<4x8x1xf32, #tpu.memory_space<vmem>>, vector<1x8x1xf32>
      %159 = vector.shape_cast %158 : vector<1x8x1xf32> to vector<8x1xf32>
      %160 = vector.shape_cast %157 : vector<8x1xf32> to vector<1x8x1xf32>
      tpu.vector_store %arg10[%c3_110, %c0_111, %c0_112], %160 {strides = array<i32>} : memref<4x8x1xf32, #tpu.memory_space<vmem>>, vector<1x8x1xf32>,
      %c3_113 = arith.constant 3 : index
      %c0_114 = arith.constant 0 : index
      %c0_115 = arith.constant 0 : index
      %161 = vector.load %arg11[%c3_113, %c0_114, %c0_115] : memref<4x8x32xf32, #tpu.memory_space<vmem>>, vector<1x8x32xf32>
      %162 = vector.shape_cast %161 : vector<1x8x32xf32> to vector<8x32xf32>
      %163 = vector.broadcast %148 : vector<8x1xf32> to vector<8x32xf32>
      %164 = arith.mulf %163, %162 : vector<8x32xf32>
      %cst_116 = arith.constant dense<0.000000e+00> : vector<8x32xf32>
      %165 = tpu.matmul %151, %140, %cst_116 {dimension_numbers = #tpu.dot_dimension_numbers<[1], [0], [0], [1], [0, 0, 1, 1], [], []>} : vector<8x8xf32>, vector<8x32xf32>, vector<8x32xf32> -> vector<8x32xf32>
      %166 = arith.addf %164, %165 : vector<8x32xf32>
      %c3_117 = arith.constant 3 : index
      %c0_118 = arith.constant 0 : index
      %c0_119 = arith.constant 0 : index
      %167 = vector.load %arg11[%c3_117, %c0_118, %c0_119] : memref<4x8x32xf32, #tpu.memory_space<vmem>>, vector<1x8x32xf32>
      %168 = vector.shape_cast %167 : vector<1x8x32xf32> to vector<8x32xf32>
      %169 = vector.shape_cast %166 : vector<8x32xf32> to vector<1x8x32xf32>
      tpu.vector_store %arg11[%c3_117, %c0_118, %c0_119], %169 {strides = array<i32>} : memref<4x8x32xf32, #tpu.memory_space<vmem>>, vector<1x8x32xf32>,
      %c3_120 = arith.constant 3 : index
      %c0_121 = arith.constant 0 : index
      %c0_122 = arith.constant 0 : index
      %170 = vector.load %arg9[%c3_120, %c0_121, %c0_122] : memref<4x8x1xf32, #tpu.memory_space<vmem>>, vector<1x8x1xf32>
      %171 = vector.shape_cast %170 : vector<1x8x1xf32> to vector<8x1xf32>
      %172 = vector.shape_cast %146 : vector<8x1xf32> to vector<1x8x1xf32>
      tpu.vector_store %arg9[%c3_120, %c0_121, %c0_122], %172 {strides = array<i32>} : memref<4x8x1xf32, #tpu.memory_space<vmem>>, vector<1x8x1xf32>,
    } else {
    }
    %10 = arith.cmpi eq, %3, %1 : i32
    %11 = arith.extui %10 : i1 to i32
    %c0_i32_2 = arith.constant 0 : i32
    %12 = arith.cmpi ne, %11, %c0_i32_2 : i32
    scf.if %12 {
      %c0 = arith.constant 0 : index
      %c0_3 = arith.constant 0 : index
      %c0_4 = arith.constant 0 : index
      %13 = vector.load %arg5[%c0, %c0_3, %c0_4] : memref<1x8x128xf32, #tpu.memory_space<vmem>>, vector<1x8x32xf32>
      %14 = vector.shape_cast %13 : vector<1x8x32xf32> to vector<8x32xf32>
      %cst = arith.constant 0.176776692 : f32
      %15 = vector.broadcast %cst : f32 to vector<8x32xf32>
      %16 = arith.mulf %14, %15 : vector<8x32xf32>
      %c0_5 = arith.constant 0 : index
      %c0_6 = arith.constant 0 : index
      %c0_7 = arith.constant 0 : index
      %17 = vector.load %arg6[%c0_5, %c0_6, %c0_7] : memref<1x8x128xf32, #tpu.memory_space<vmem>>, vector<1x8x32xf32>
      %18 = vector.shape_cast %17 : vector<1x8x32xf32> to vector<8x32xf32>
      %c0_8 = arith.constant 0 : index
      %c0_9 = arith.constant 0 : index
      %c0_10 = arith.constant 0 : index
      %19 = vector.load %arg7[%c0_8, %c0_9, %c0_10] : memref<1x8x128xf32, #tpu.memory_space<vmem>>, vector<1x8x32xf32>
      %20 = vector.shape_cast %19 : vector<1x8x32xf32> to vector<8x32xf32>
      %cst_11 = arith.constant dense<0.000000e+00> : vector<8x8xf32>
      %21 = tpu.matmul %16, %18, %cst_11 {dimension_numbers = #tpu.dot_dimension_numbers<[1], [1], [0], [0], [0, 0, 1, 0], [], []>} : vector<8x32xf32>, vector<8x32xf32>, vector<8x8xf32> -> vector<8x8xf32>
      %22 = tpu.iota {dimensions = array<i32: 0>} : vector<8x8xi32>
      %23 = tpu.iota {dimensions = array<i32: 1>} : vector<8x8xi32>
      %24 = arith.cmpi sgt, %23, %22 : vector<8x8xi32>
      %cst_12 = arith.constant -1.000000e+04 : f32
      %cst_13 = arith.constant 0.000000e+00 : f32
      %25 = vector.broadcast %cst_12 : f32 to vector<8x8xf32>
      %26 = vector.broadcast %cst_13 : f32 to vector<8x8xf32>
      %27 = arith.select %24, %25, %26 : vector<8x8xi1>, vector<8x8xf32>
      %28 = arith.addf %21, %27 : vector<8x8xf32>
      %c0_14 = arith.constant 0 : index
      %c0_15 = arith.constant 0 : index
      %c0_16 = arith.constant 0 : index
      %29 = vector.load %arg9[%c0_14, %c0_15, %c0_16] : memref<4x8x1xf32, #tpu.memory_space<vmem>>, vector<1x8x1xf32>
      %30 = vector.shape_cast %29 : vector<1x8x1xf32> to vector<8x1xf32>
      %cst_17 = arith.constant dense<0xFF800000> : vector<8xf32>
      %31 = vector.multi_reduction <maximumf>, %28, %cst_17 [1] : vector<8x8xf32> to vector<8xf32>
      %32 = vector.shape_cast %31 : vector<8xf32> to vector<8x1xf32>
      %33 = arith.maximumf %30, %32 : vector<8x1xf32>
      %34 = arith.subf %30, %33 : vector<8x1xf32>
      %35 = math.exp %34 : vector<8x1xf32>
      %36 = vector.broadcast %33 : vector<8x1xf32> to vector<8x8xf32>
      %37 = arith.subf %28, %36 : vector<8x8xf32>
      %38 = math.exp %37 : vector<8x8xf32>
      %c0_18 = arith.constant 0 : index
      %c0_19 = arith.constant 0 : index
      %c0_20 = arith.constant 0 : index
      %39 = vector.load %arg10[%c0_18, %c0_19, %c0_20] : memref<4x8x1xf32, #tpu.memory_space<vmem>>, vector<1x8x1xf32>
      %40 = vector.shape_cast %39 : vector<1x8x1xf32> to vector<8x1xf32>
      %41 = arith.mulf %35, %40 : vector<8x1xf32>
      %cst_21 = arith.constant dense<0.000000e+00> : vector<8xf32>
      %42 = vector.multi_reduction <add>, %38, %cst_21 [1] : vector<8x8xf32> to vector<8xf32>
      %43 = vector.shape_cast %42 : vector<8xf32> to vector<8x1xf32>
      %44 = arith.addf %41, %43 : vector<8x1xf32>
      %c0_22 = arith.constant 0 : index
      %c0_23 = arith.constant 0 : index
      %c0_24 = arith.constant 0 : index
      %45 = vector.load %arg10[%c0_22, %c0_23, %c0_24] : memref<4x8x1xf32, #tpu.memory_space<vmem>>, vector<1x8x1xf32>
      %46 = vector.shape_cast %45 : vector<1x8x1xf32> to vector<8x1xf32>
      %47 = vector.shape_cast %44 : vector<8x1xf32> to vector<1x8x1xf32>
      tpu.vector_store %arg10[%c0_22, %c0_23, %c0_24], %47 {strides = array<i32>} : memref<4x8x1xf32, #tpu.memory_space<vmem>>, vector<1x8x1xf32>,
      %c0_25 = arith.constant 0 : index
      %c0_26 = arith.constant 0 : index
      %c0_27 = arith.constant 0 : index
      %48 = vector.load %arg11[%c0_25, %c0_26, %c0_27] : memref<4x8x32xf32, #tpu.memory_space<vmem>>, vector<1x8x32xf32>
      %49 = vector.shape_cast %48 : vector<1x8x32xf32> to vector<8x32xf32>
      %50 = vector.broadcast %35 : vector<8x1xf32> to vector<8x32xf32>
      %51 = arith.mulf %50, %49 : vector<8x32xf32>
      %cst_28 = arith.constant dense<0.000000e+00> : vector<8x32xf32>
      %52 = tpu.matmul %38, %20, %cst_28 {dimension_numbers = #tpu.dot_dimension_numbers<[1], [0], [0], [1], [0, 0, 1, 1], [], []>} : vector<8x8xf32>, vector<8x32xf32>, vector<8x32xf32> -> vector<8x32xf32>
      %53 = arith.addf %51, %52 : vector<8x32xf32>
      %c0_29 = arith.constant 0 : index
      %c0_30 = arith.constant 0 : index
      %c0_31 = arith.constant 0 : index
      %54 = vector.load %arg11[%c0_29, %c0_30, %c0_31] : memref<4x8x32xf32, #tpu.memory_space<vmem>>, vector<1x8x32xf32>
      %55 = vector.shape_cast %54 : vector<1x8x32xf32> to vector<8x32xf32>
      %56 = vector.shape_cast %53 : vector<8x32xf32> to vector<1x8x32xf32>
      tpu.vector_store %arg11[%c0_29, %c0_30, %c0_31], %56 {strides = array<i32>} : memref<4x8x32xf32, #tpu.memory_space<vmem>>, vector<1x8x32xf32>,
      %c0_32 = arith.constant 0 : index
      %c0_33 = arith.constant 0 : index
      %c0_34 = arith.constant 0 : index
      %57 = vector.load %arg9[%c0_32, %c0_33, %c0_34] : memref<4x8x1xf32, #tpu.memory_space<vmem>>, vector<1x8x1xf32>
      %58 = vector.shape_cast %57 : vector<1x8x1xf32> to vector<8x1xf32>
      %59 = vector.shape_cast %33 : vector<8x1xf32> to vector<1x8x1xf32>
      tpu.vector_store %arg9[%c0_32, %c0_33, %c0_34], %59 {strides = array<i32>} : memref<4x8x1xf32, #tpu.memory_space<vmem>>, vector<1x8x1xf32>,
      %c0_35 = arith.constant 0 : index
      %c0_36 = arith.constant 0 : index
      %c32 = arith.constant 32 : index
      %60 = vector.load %arg5[%c0_35, %c0_36, %c32] : memref<1x8x128xf32, #tpu.memory_space<vmem>>, vector<1x8x32xf32>
      %61 = vector.shape_cast %60 : vector<1x8x32xf32> to vector<8x32xf32>
      %cst_37 = arith.constant 0.176776692 : f32
      %62 = vector.broadcast %cst_37 : f32 to vector<8x32xf32>
      %63 = arith.mulf %61, %62 : vector<8x32xf32>
      %c0_38 = arith.constant 0 : index
      %c0_39 = arith.constant 0 : index
      %c32_40 = arith.constant 32 : index
      %64 = vector.load %arg6[%c0_38, %c0_39, %c32_40] : memref<1x8x128xf32, #tpu.memory_space<vmem>>, vector<1x8x32xf32>
      %65 = vector.shape_cast %64 : vector<1x8x32xf32> to vector<8x32xf32>
      %c0_41 = arith.constant 0 : index
      %c0_42 = arith.constant 0 : index
      %c32_43 = arith.constant 32 : index
      %66 = vector.load %arg7[%c0_41, %c0_42, %c32_43] : memref<1x8x128xf32, #tpu.memory_space<vmem>>, vector<1x8x32xf32>
      %67 = vector.shape_cast %66 : vector<1x8x32xf32> to vector<8x32xf32>
      %cst_44 = arith.constant dense<0.000000e+00> : vector<8x8xf32>
      %68 = tpu.matmul %63, %65, %cst_44 {dimension_numbers = #tpu.dot_dimension_numbers<[1], [1], [0], [0], [0, 0, 1, 0], [], []>} : vector<8x32xf32>, vector<8x32xf32>, vector<8x8xf32> -> vector<8x8xf32>
      %69 = tpu.iota {dimensions = array<i32: 0>} : vector<8x8xi32>
      %70 = tpu.iota {dimensions = array<i32: 1>} : vector<8x8xi32>
      %71 = arith.cmpi sgt, %70, %69 : vector<8x8xi32>
      %cst_45 = arith.constant -1.000000e+04 : f32
      %cst_46 = arith.constant 0.000000e+00 : f32
      %72 = vector.broadcast %cst_45 : f32 to vector<8x8xf32>
      %73 = vector.broadcast %cst_46 : f32 to vector<8x8xf32>
      %74 = arith.select %71, %72, %73 : vector<8x8xi1>, vector<8x8xf32>
      %75 = arith.addf %68, %74 : vector<8x8xf32>
      %c1 = arith.constant 1 : index
      %c0_47 = arith.constant 0 : index
      %c0_48 = arith.constant 0 : index
      %76 = vector.load %arg9[%c1, %c0_47, %c0_48] : memref<4x8x1xf32, #tpu.memory_space<vmem>>, vector<1x8x1xf32>
      %77 = vector.shape_cast %76 : vector<1x8x1xf32> to vector<8x1xf32>
      %cst_49 = arith.constant dense<0xFF800000> : vector<8xf32>
      %78 = vector.multi_reduction <maximumf>, %75, %cst_49 [1] : vector<8x8xf32> to vector<8xf32>
      %79 = vector.shape_cast %78 : vector<8xf32> to vector<8x1xf32>
      %80 = arith.maximumf %77, %79 : vector<8x1xf32>
      %81 = arith.subf %77, %80 : vector<8x1xf32>
      %82 = math.exp %81 : vector<8x1xf32>
      %83 = vector.broadcast %80 : vector<8x1xf32> to vector<8x8xf32>
      %84 = arith.subf %75, %83 : vector<8x8xf32>
      %85 = math.exp %84 : vector<8x8xf32>
      %c1_50 = arith.constant 1 : index
      %c0_51 = arith.constant 0 : index
      %c0_52 = arith.constant 0 : index
      %86 = vector.load %arg10[%c1_50, %c0_51, %c0_52] : memref<4x8x1xf32, #tpu.memory_space<vmem>>, vector<1x8x1xf32>
      %87 = vector.shape_cast %86 : vector<1x8x1xf32> to vector<8x1xf32>
      %88 = arith.mulf %82, %87 : vector<8x1xf32>
      %cst_53 = arith.constant dense<0.000000e+00> : vector<8xf32>
      %89 = vector.multi_reduction <add>, %85, %cst_53 [1] : vector<8x8xf32> to vector<8xf32>
      %90 = vector.shape_cast %89 : vector<8xf32> to vector<8x1xf32>
      %91 = arith.addf %88, %90 : vector<8x1xf32>
      %c1_54 = arith.constant 1 : index
      %c0_55 = arith.constant 0 : index
      %c0_56 = arith.constant 0 : index
      %92 = vector.load %arg10[%c1_54, %c0_55, %c0_56] : memref<4x8x1xf32, #tpu.memory_space<vmem>>, vector<1x8x1xf32>
      %93 = vector.shape_cast %92 : vector<1x8x1xf32> to vector<8x1xf32>
      %94 = vector.shape_cast %91 : vector<8x1xf32> to vector<1x8x1xf32>
      tpu.vector_store %arg10[%c1_54, %c0_55, %c0_56], %94 {strides = array<i32>} : memref<4x8x1xf32, #tpu.memory_space<vmem>>, vector<1x8x1xf32>,
      %c1_57 = arith.constant 1 : index
      %c0_58 = arith.constant 0 : index
      %c0_59 = arith.constant 0 : index
      %95 = vector.load %arg11[%c1_57, %c0_58, %c0_59] : memref<4x8x32xf32, #tpu.memory_space<vmem>>, vector<1x8x32xf32>
      %96 = vector.shape_cast %95 : vector<1x8x32xf32> to vector<8x32xf32>
      %97 = vector.broadcast %82 : vector<8x1xf32> to vector<8x32xf32>
      %98 = arith.mulf %97, %96 : vector<8x32xf32>
      %cst_60 = arith.constant dense<0.000000e+00> : vector<8x32xf32>
      %99 = tpu.matmul %85, %67, %cst_60 {dimension_numbers = #tpu.dot_dimension_numbers<[1], [0], [0], [1], [0, 0, 1, 1], [], []>} : vector<8x8xf32>, vector<8x32xf32>, vector<8x32xf32> -> vector<8x32xf32>
      %100 = arith.addf %98, %99 : vector<8x32xf32>
      %c1_61 = arith.constant 1 : index
      %c0_62 = arith.constant 0 : index
      %c0_63 = arith.constant 0 : index
      %101 = vector.load %arg11[%c1_61, %c0_62, %c0_63] : memref<4x8x32xf32, #tpu.memory_space<vmem>>, vector<1x8x32xf32>
      %102 = vector.shape_cast %101 : vector<1x8x32xf32> to vector<8x32xf32>
      %103 = vector.shape_cast %100 : vector<8x32xf32> to vector<1x8x32xf32>
      tpu.vector_store %arg11[%c1_61, %c0_62, %c0_63], %103 {strides = array<i32>} : memref<4x8x32xf32, #tpu.memory_space<vmem>>, vector<1x8x32xf32>,
      %c1_64 = arith.constant 1 : index
      %c0_65 = arith.constant 0 : index
      %c0_66 = arith.constant 0 : index
      %104 = vector.load %arg9[%c1_64, %c0_65, %c0_66] : memref<4x8x1xf32, #tpu.memory_space<vmem>>, vector<1x8x1xf32>
      %105 = vector.shape_cast %104 : vector<1x8x1xf32> to vector<8x1xf32>
      %106 = vector.shape_cast %80 : vector<8x1xf32> to vector<1x8x1xf32>
      tpu.vector_store %arg9[%c1_64, %c0_65, %c0_66], %106 {strides = array<i32>} : memref<4x8x1xf32, #tpu.memory_space<vmem>>, vector<1x8x1xf32>,
      %c0_67 = arith.constant 0 : index
      %c0_68 = arith.constant 0 : index
      %c64 = arith.constant 64 : index
      %107 = vector.load %arg5[%c0_67, %c0_68, %c64] : memref<1x8x128xf32, #tpu.memory_space<vmem>>, vector<1x8x32xf32>
      %108 = vector.shape_cast %107 : vector<1x8x32xf32> to vector<8x32xf32>
      %cst_69 = arith.constant 0.176776692 : f32
      %109 = vector.broadcast %cst_69 : f32 to vector<8x32xf32>
      %110 = arith.mulf %108, %109 : vector<8x32xf32>
      %c0_70 = arith.constant 0 : index
      %c0_71 = arith.constant 0 : index
      %c64_72 = arith.constant 64 : index
      %111 = vector.load %arg6[%c0_70, %c0_71, %c64_72] : memref<1x8x128xf32, #tpu.memory_space<vmem>>, vector<1x8x32xf32>
      %112 = vector.shape_cast %111 : vector<1x8x32xf32> to vector<8x32xf32>
      %c0_73 = arith.constant 0 : index
      %c0_74 = arith.constant 0 : index
      %c64_75 = arith.constant 64 : index
      %113 = vector.load %arg7[%c0_73, %c0_74, %c64_75] : memref<1x8x128xf32, #tpu.memory_space<vmem>>, vector<1x8x32xf32>
      %114 = vector.shape_cast %113 : vector<1x8x32xf32> to vector<8x32xf32>
      %cst_76 = arith.constant dense<0.000000e+00> : vector<8x8xf32>
      %115 = tpu.matmul %110, %112, %cst_76 {dimension_numbers = #tpu.dot_dimension_numbers<[1], [1], [0], [0], [0, 0, 1, 0], [], []>} : vector<8x32xf32>, vector<8x32xf32>, vector<8x8xf32> -> vector<8x8xf32>
      %116 = tpu.iota {dimensions = array<i32: 0>} : vector<8x8xi32>
      %117 = tpu.iota {dimensions = array<i32: 1>} : vector<8x8xi32>
      %118 = arith.cmpi sgt, %117, %116 : vector<8x8xi32>
      %cst_77 = arith.constant -1.000000e+04 : f32
      %cst_78 = arith.constant 0.000000e+00 : f32
      %119 = vector.broadcast %cst_77 : f32 to vector<8x8xf32>
      %120 = vector.broadcast %cst_78 : f32 to vector<8x8xf32>
      %121 = arith.select %118, %119, %120 : vector<8x8xi1>, vector<8x8xf32>
      %122 = arith.addf %115, %121 : vector<8x8xf32>
      %c2 = arith.constant 2 : index
      %c0_79 = arith.constant 0 : index
      %c0_80 = arith.constant 0 : index
      %123 = vector.load %arg9[%c2, %c0_79, %c0_80] : memref<4x8x1xf32, #tpu.memory_space<vmem>>, vector<1x8x1xf32>
      %124 = vector.shape_cast %123 : vector<1x8x1xf32> to vector<8x1xf32>
      %cst_81 = arith.constant dense<0xFF800000> : vector<8xf32>
      %125 = vector.multi_reduction <maximumf>, %122, %cst_81 [1] : vector<8x8xf32> to vector<8xf32>
      %126 = vector.shape_cast %125 : vector<8xf32> to vector<8x1xf32>
      %127 = arith.maximumf %124, %126 : vector<8x1xf32>
      %128 = arith.subf %124, %127 : vector<8x1xf32>
      %129 = math.exp %128 : vector<8x1xf32>
      %130 = vector.broadcast %127 : vector<8x1xf32> to vector<8x8xf32>
      %131 = arith.subf %122, %130 : vector<8x8xf32>
      %132 = math.exp %131 : vector<8x8xf32>
      %c2_82 = arith.constant 2 : index
      %c0_83 = arith.constant 0 : index
      %c0_84 = arith.constant 0 : index
      %133 = vector.load %arg10[%c2_82, %c0_83, %c0_84] : memref<4x8x1xf32, #tpu.memory_space<vmem>>, vector<1x8x1xf32>
      %134 = vector.shape_cast %133 : vector<1x8x1xf32> to vector<8x1xf32>
      %135 = arith.mulf %129, %134 : vector<8x1xf32>
      %cst_85 = arith.constant dense<0.000000e+00> : vector<8xf32>
      %136 = vector.multi_reduction <add>, %132, %cst_85 [1] : vector<8x8xf32> to vector<8xf32>
      %137 = vector.shape_cast %136 : vector<8xf32> to vector<8x1xf32>
      %138 = arith.addf %135, %137 : vector<8x1xf32>
      %c2_86 = arith.constant 2 : index
      %c0_87 = arith.constant 0 : index
      %c0_88 = arith.constant 0 : index
      %139 = vector.load %arg10[%c2_86, %c0_87, %c0_88] : memref<4x8x1xf32, #tpu.memory_space<vmem>>, vector<1x8x1xf32>
      %140 = vector.shape_cast %139 : vector<1x8x1xf32> to vector<8x1xf32>
      %141 = vector.shape_cast %138 : vector<8x1xf32> to vector<1x8x1xf32>
      tpu.vector_store %arg10[%c2_86, %c0_87, %c0_88], %141 {strides = array<i32>} : memref<4x8x1xf32, #tpu.memory_space<vmem>>, vector<1x8x1xf32>,
      %c2_89 = arith.constant 2 : index
      %c0_90 = arith.constant 0 : index
      %c0_91 = arith.constant 0 : index
      %142 = vector.load %arg11[%c2_89, %c0_90, %c0_91] : memref<4x8x32xf32, #tpu.memory_space<vmem>>, vector<1x8x32xf32>
      %143 = vector.shape_cast %142 : vector<1x8x32xf32> to vector<8x32xf32>
      %144 = vector.broadcast %129 : vector<8x1xf32> to vector<8x32xf32>
      %145 = arith.mulf %144, %143 : vector<8x32xf32>
      %cst_92 = arith.constant dense<0.000000e+00> : vector<8x32xf32>
      %146 = tpu.matmul %132, %114, %cst_92 {dimension_numbers = #tpu.dot_dimension_numbers<[1], [0], [0], [1], [0, 0, 1, 1], [], []>} : vector<8x8xf32>, vector<8x32xf32>, vector<8x32xf32> -> vector<8x32xf32>
      %147 = arith.addf %145, %146 : vector<8x32xf32>
      %c2_93 = arith.constant 2 : index
      %c0_94 = arith.constant 0 : index
      %c0_95 = arith.constant 0 : index
      %148 = vector.load %arg11[%c2_93, %c0_94, %c0_95] : memref<4x8x32xf32, #tpu.memory_space<vmem>>, vector<1x8x32xf32>
      %149 = vector.shape_cast %148 : vector<1x8x32xf32> to vector<8x32xf32>
      %150 = vector.shape_cast %147 : vector<8x32xf32> to vector<1x8x32xf32>
      tpu.vector_store %arg11[%c2_93, %c0_94, %c0_95], %150 {strides = array<i32>} : memref<4x8x32xf32, #tpu.memory_space<vmem>>, vector<1x8x32xf32>,
      %c2_96 = arith.constant 2 : index
      %c0_97 = arith.constant 0 : index
      %c0_98 = arith.constant 0 : index
      %151 = vector.load %arg9[%c2_96, %c0_97, %c0_98] : memref<4x8x1xf32, #tpu.memory_space<vmem>>, vector<1x8x1xf32>
      %152 = vector.shape_cast %151 : vector<1x8x1xf32> to vector<8x1xf32>
      %153 = vector.shape_cast %127 : vector<8x1xf32> to vector<1x8x1xf32>
      tpu.vector_store %arg9[%c2_96, %c0_97, %c0_98], %153 {strides = array<i32>} : memref<4x8x1xf32, #tpu.memory_space<vmem>>, vector<1x8x1xf32>,
      %c0_99 = arith.constant 0 : index
      %c0_100 = arith.constant 0 : index
      %c96 = arith.constant 96 : index
      %154 = vector.load %arg5[%c0_99, %c0_100, %c96] : memref<1x8x128xf32, #tpu.memory_space<vmem>>, vector<1x8x32xf32>
      %155 = vector.shape_cast %154 : vector<1x8x32xf32> to vector<8x32xf32>
      %cst_101 = arith.constant 0.176776692 : f32
      %156 = vector.broadcast %cst_101 : f32 to vector<8x32xf32>
      %157 = arith.mulf %155, %156 : vector<8x32xf32>
      %c0_102 = arith.constant 0 : index
      %c0_103 = arith.constant 0 : index
      %c96_104 = arith.constant 96 : index
      %158 = vector.load %arg6[%c0_102, %c0_103, %c96_104] : memref<1x8x128xf32, #tpu.memory_space<vmem>>, vector<1x8x32xf32>
      %159 = vector.shape_cast %158 : vector<1x8x32xf32> to vector<8x32xf32>
      %c0_105 = arith.constant 0 : index
      %c0_106 = arith.constant 0 : index
      %c96_107 = arith.constant 96 : index
      %160 = vector.load %arg7[%c0_105, %c0_106, %c96_107] : memref<1x8x128xf32, #tpu.memory_space<vmem>>, vector<1x8x32xf32>
      %161 = vector.shape_cast %160 : vector<1x8x32xf32> to vector<8x32xf32>
      %cst_108 = arith.constant dense<0.000000e+00> : vector<8x8xf32>
      %162 = tpu.matmul %157, %159, %cst_108 {dimension_numbers = #tpu.dot_dimension_numbers<[1], [1], [0], [0], [0, 0, 1, 0], [], []>} : vector<8x32xf32>, vector<8x32xf32>, vector<8x8xf32> -> vector<8x8xf32>
      %163 = tpu.iota {dimensions = array<i32: 0>} : vector<8x8xi32>
      %164 = tpu.iota {dimensions = array<i32: 1>} : vector<8x8xi32>
      %165 = arith.cmpi sgt, %164, %163 : vector<8x8xi32>
      %cst_109 = arith.constant -1.000000e+04 : f32
      %cst_110 = arith.constant 0.000000e+00 : f32
      %166 = vector.broadcast %cst_109 : f32 to vector<8x8xf32>
      %167 = vector.broadcast %cst_110 : f32 to vector<8x8xf32>
      %168 = arith.select %165, %166, %167 : vector<8x8xi1>, vector<8x8xf32>
      %169 = arith.addf %162, %168 : vector<8x8xf32>
      %c3 = arith.constant 3 : index
      %c0_111 = arith.constant 0 : index
      %c0_112 = arith.constant 0 : index
      %170 = vector.load %arg9[%c3, %c0_111, %c0_112] : memref<4x8x1xf32, #tpu.memory_space<vmem>>, vector<1x8x1xf32>
      %171 = vector.shape_cast %170 : vector<1x8x1xf32> to vector<8x1xf32>
      %cst_113 = arith.constant dense<0xFF800000> : vector<8xf32>
      %172 = vector.multi_reduction <maximumf>, %169, %cst_113 [1] : vector<8x8xf32> to vector<8xf32>
      %173 = vector.shape_cast %172 : vector<8xf32> to vector<8x1xf32>
      %174 = arith.maximumf %171, %173 : vector<8x1xf32>
      %175 = arith.subf %171, %174 : vector<8x1xf32>
      %176 = math.exp %175 : vector<8x1xf32>
      %177 = vector.broadcast %174 : vector<8x1xf32> to vector<8x8xf32>
      %178 = arith.subf %169, %177 : vector<8x8xf32>
      %179 = math.exp %178 : vector<8x8xf32>
      %c3_114 = arith.constant 3 : index
      %c0_115 = arith.constant 0 : index
      %c0_116 = arith.constant 0 : index
      %180 = vector.load %arg10[%c3_114, %c0_115, %c0_116] : memref<4x8x1xf32, #tpu.memory_space<vmem>>, vector<1x8x1xf32>
      %181 = vector.shape_cast %180 : vector<1x8x1xf32> to vector<8x1xf32>
      %182 = arith.mulf %176, %181 : vector<8x1xf32>
      %cst_117 = arith.constant dense<0.000000e+00> : vector<8xf32>
      %183 = vector.multi_reduction <add>, %179, %cst_117 [1] : vector<8x8xf32> to vector<8xf32>
      %184 = vector.shape_cast %183 : vector<8xf32> to vector<8x1xf32>
      %185 = arith.addf %182, %184 : vector<8x1xf32>
      %c3_118 = arith.constant 3 : index
      %c0_119 = arith.constant 0 : index
      %c0_120 = arith.constant 0 : index
      %186 = vector.load %arg10[%c3_118, %c0_119, %c0_120] : memref<4x8x1xf32, #tpu.memory_space<vmem>>, vector<1x8x1xf32>
      %187 = vector.shape_cast %186 : vector<1x8x1xf32> to vector<8x1xf32>
      %188 = vector.shape_cast %185 : vector<8x1xf32> to vector<1x8x1xf32>
      tpu.vector_store %arg10[%c3_118, %c0_119, %c0_120], %188 {strides = array<i32>} : memref<4x8x1xf32, #tpu.memory_space<vmem>>, vector<1x8x1xf32>,
      %c3_121 = arith.constant 3 : index
      %c0_122 = arith.constant 0 : index
      %c0_123 = arith.constant 0 : index
      %189 = vector.load %arg11[%c3_121, %c0_122, %c0_123] : memref<4x8x32xf32, #tpu.memory_space<vmem>>, vector<1x8x32xf32>
      %190 = vector.shape_cast %189 : vector<1x8x32xf32> to vector<8x32xf32>
      %191 = vector.broadcast %176 : vector<8x1xf32> to vector<8x32xf32>
      %192 = arith.mulf %191, %190 : vector<8x32xf32>
      %cst_124 = arith.constant dense<0.000000e+00> : vector<8x32xf32>
      %193 = tpu.matmul %179, %161, %cst_124 {dimension_numbers = #tpu.dot_dimension_numbers<[1], [0], [0], [1], [0, 0, 1, 1], [], []>} : vector<8x8xf32>, vector<8x32xf32>, vector<8x32xf32> -> vector<8x32xf32>
      %194 = arith.addf %192, %193 : vector<8x32xf32>
      %c3_125 = arith.constant 3 : index
      %c0_126 = arith.constant 0 : index
      %c0_127 = arith.constant 0 : index
      %195 = vector.load %arg11[%c3_125, %c0_126, %c0_127] : memref<4x8x32xf32, #tpu.memory_space<vmem>>, vector<1x8x32xf32>
      %196 = vector.shape_cast %195 : vector<1x8x32xf32> to vector<8x32xf32>
      %197 = vector.shape_cast %194 : vector<8x32xf32> to vector<1x8x32xf32>
      tpu.vector_store %arg11[%c3_125, %c0_126, %c0_127], %197 {strides = array<i32>} : memref<4x8x32xf32, #tpu.memory_space<vmem>>, vector<1x8x32xf32>,
      %c3_128 = arith.constant 3 : index
      %c0_129 = arith.constant 0 : index
      %c0_130 = arith.constant 0 : index
      %198 = vector.load %arg9[%c3_128, %c0_129, %c0_130] : memref<4x8x1xf32, #tpu.memory_space<vmem>>, vector<1x8x1xf32>
      %199 = vector.shape_cast %198 : vector<1x8x1xf32> to vector<8x1xf32>
      %200 = vector.shape_cast %174 : vector<8x1xf32> to vector<1x8x1xf32>
      tpu.vector_store %arg9[%c3_128, %c0_129, %c0_130], %200 {strides = array<i32>} : memref<4x8x1xf32, #tpu.memory_space<vmem>>, vector<1x8x1xf32>,
      %c0_131 = arith.constant 0 : index
      %c0_132 = arith.constant 0 : index
      %c0_133 = arith.constant 0 : index
      %201 = vector.load %arg10[%c0_131, %c0_132, %c0_133] : memref<4x8x1xf32, #tpu.memory_space<vmem>>, vector<1x8x1xf32>
      %202 = vector.shape_cast %201 : vector<1x8x1xf32> to vector<8x1xf32>
      %203 = tpu.reciprocal %202 {approx = true} : vector<8x1xf32> -> vector<8x1xf32>
      %204 = arith.mulf %202, %203 : vector<8x1xf32>
      %cst_134 = arith.constant 2.000000e+00 : f32
      %205 = vector.broadcast %cst_134 : f32 to vector<8x1xf32>
      %206 = arith.subf %205, %204 : vector<8x1xf32>
      %207 = arith.mulf %203, %206 : vector<8x1xf32>
      %c0_135 = arith.constant 0 : index
      %c0_136 = arith.constant 0 : index
      %c0_137 = arith.constant 0 : index
      %208 = vector.load %arg11[%c0_135, %c0_136, %c0_137] : memref<4x8x32xf32, #tpu.memory_space<vmem>>, vector<1x8x32xf32>
      %209 = vector.shape_cast %208 : vector<1x8x32xf32> to vector<8x32xf32>
      %210 = vector.broadcast %207 : vector<8x1xf32> to vector<8x32xf32>
      %211 = arith.mulf %209, %210 : vector<8x32xf32>
      %c0_138 = arith.constant 0 : index
      %c0_139 = arith.constant 0 : index
      %c0_140 = arith.constant 0 : index
      %212 = vector.load %arg8[%c0_138, %c0_139, %c0_140] : memref<1x8x128xf32, #tpu.memory_space<vmem>>, vector<1x8x32xf32>
      %213 = vector.shape_cast %212 : vector<1x8x32xf32> to vector<8x32xf32>
      %214 = vector.shape_cast %211 : vector<8x32xf32> to vector<1x8x32xf32>
      tpu.vector_store %arg8[%c0_138, %c0_139, %c0_140], %214 {strides = array<i32>} : memref<1x8x128xf32, #tpu.memory_space<vmem>>, vector<1x8x32xf32>,
      %c1_141 = arith.constant 1 : index
      %c0_142 = arith.constant 0 : index
      %c0_143 = arith.constant 0 : index
      %215 = vector.load %arg10[%c1_141, %c0_142, %c0_143] : memref<4x8x1xf32, #tpu.memory_space<vmem>>, vector<1x8x1xf32>
      %216 = vector.shape_cast %215 : vector<1x8x1xf32> to vector<8x1xf32>
      %217 = tpu.reciprocal %216 {approx = true} : vector<8x1xf32> -> vector<8x1xf32>
      %218 = arith.mulf %216, %217 : vector<8x1xf32>
      %cst_144 = arith.constant 2.000000e+00 : f32
      %219 = vector.broadcast %cst_144 : f32 to vector<8x1xf32>
      %220 = arith.subf %219, %218 : vector<8x1xf32>
      %221 = arith.mulf %217, %220 : vector<8x1xf32>
      %c1_145 = arith.constant 1 : index
      %c0_146 = arith.constant 0 : index
      %c0_147 = arith.constant 0 : index
      %222 = vector.load %arg11[%c1_145, %c0_146, %c0_147] : memref<4x8x32xf32, #tpu.memory_space<vmem>>, vector<1x8x32xf32>
      %223 = vector.shape_cast %222 : vector<1x8x32xf32> to vector<8x32xf32>
      %224 = vector.broadcast %221 : vector<8x1xf32> to vector<8x32xf32>
      %225 = arith.mulf %223, %224 : vector<8x32xf32>
      %c0_148 = arith.constant 0 : index
      %c0_149 = arith.constant 0 : index
      %c32_150 = arith.constant 32 : index
      %226 = vector.load %arg8[%c0_148, %c0_149, %c32_150] : memref<1x8x128xf32, #tpu.memory_space<vmem>>, vector<1x8x32xf32>
      %227 = vector.shape_cast %226 : vector<1x8x32xf32> to vector<8x32xf32>
      %228 = vector.shape_cast %225 : vector<8x32xf32> to vector<1x8x32xf32>
      tpu.vector_store %arg8[%c0_148, %c0_149, %c32_150], %228 {strides = array<i32>} : memref<1x8x128xf32, #tpu.memory_space<vmem>>, vector<1x8x32xf32>,
      %c2_151 = arith.constant 2 : index
      %c0_152 = arith.constant 0 : index
      %c0_153 = arith.constant 0 : index
      %229 = vector.load %arg10[%c2_151, %c0_152, %c0_153] : memref<4x8x1xf32, #tpu.memory_space<vmem>>, vector<1x8x1xf32>
      %230 = vector.shape_cast %229 : vector<1x8x1xf32> to vector<8x1xf32>
      %231 = tpu.reciprocal %230 {approx = true} : vector<8x1xf32> -> vector<8x1xf32>
      %232 = arith.mulf %230, %231 : vector<8x1xf32>
      %cst_154 = arith.constant 2.000000e+00 : f32
      %233 = vector.broadcast %cst_154 : f32 to vector<8x1xf32>
      %234 = arith.subf %233, %232 : vector<8x1xf32>
      %235 = arith.mulf %231, %234 : vector<8x1xf32>
      %c2_155 = arith.constant 2 : index
      %c0_156 = arith.constant 0 : index
      %c0_157 = arith.constant 0 : index
      %236 = vector.load %arg11[%c2_155, %c0_156, %c0_157] : memref<4x8x32xf32, #tpu.memory_space<vmem>>, vector<1x8x32xf32>
      %237 = vector.shape_cast %236 : vector<1x8x32xf32> to vector<8x32xf32>
      %238 = vector.broadcast %235 : vector<8x1xf32> to vector<8x32xf32>
      %239 = arith.mulf %237, %238 : vector<8x32xf32>
      %c0_158 = arith.constant 0 : index
      %c0_159 = arith.constant 0 : index
      %c64_160 = arith.constant 64 : index
      %240 = vector.load %arg8[%c0_158, %c0_159, %c64_160] : memref<1x8x128xf32, #tpu.memory_space<vmem>>, vector<1x8x32xf32>
      %241 = vector.shape_cast %240 : vector<1x8x32xf32> to vector<8x32xf32>
      %242 = vector.shape_cast %239 : vector<8x32xf32> to vector<1x8x32xf32>
      tpu.vector_store %arg8[%c0_158, %c0_159, %c64_160], %242 {strides = array<i32>} : memref<1x8x128xf32, #tpu.memory_space<vmem>>, vector<1x8x32xf32>,
      %c3_161 = arith.constant 3 : index
      %c0_162 = arith.constant 0 : index
      %c0_163 = arith.constant 0 : index
      %243 = vector.load %arg10[%c3_161, %c0_162, %c0_163] : memref<4x8x1xf32, #tpu.memory_space<vmem>>, vector<1x8x1xf32>
      %244 = vector.shape_cast %243 : vector<1x8x1xf32> to vector<8x1xf32>
      %245 = tpu.reciprocal %244 {approx = true} : vector<8x1xf32> -> vector<8x1xf32>
      %246 = arith.mulf %244, %245 : vector<8x1xf32>
      %cst_164 = arith.constant 2.000000e+00 : f32
      %247 = vector.broadcast %cst_164 : f32 to vector<8x1xf32>
      %248 = arith.subf %247, %246 : vector<8x1xf32>
      %249 = arith.mulf %245, %248 : vector<8x1xf32>
      %c3_165 = arith.constant 3 : index
      %c0_166 = arith.constant 0 : index
      %c0_167 = arith.constant 0 : index
      %250 = vector.load %arg11[%c3_165, %c0_166, %c0_167] : memref<4x8x32xf32, #tpu.memory_space<vmem>>, vector<1x8x32xf32>
      %251 = vector.shape_cast %250 : vector<1x8x32xf32> to vector<8x32xf32>
      %252 = vector.broadcast %249 : vector<8x1xf32> to vector<8x32xf32>
      %253 = arith.mulf %251, %252 : vector<8x32xf32>
      %c0_168 = arith.constant 0 : index
      %c0_169 = arith.constant 0 : index
      %c96_170 = arith.constant 96 : index
      %254 = vector.load %arg8[%c0_168, %c0_169, %c96_170] : memref<1x8x128xf32, #tpu.memory_space<vmem>>, vector<1x8x32xf32>
      %255 = vector.shape_cast %254 : vector<1x8x32xf32> to vector<8x32xf32>
      %256 = vector.shape_cast %253 : vector<8x32xf32> to vector<1x8x32xf32>
      tpu.vector_store %arg8[%c0_168, %c0_169, %c96_170], %256 {strides = array<i32>} : memref<1x8x128xf32, #tpu.memory_space<vmem>>, vector<1x8x32xf32>,
    } else {
    }
    return
  }
  func.func @transform_0(%arg0: i32, %arg1: i32, %arg2: i32, %arg3: memref<1xi32, #tpu.memory_space<smem>>, %arg4: memref<1xi32, #tpu.memory_space<smem>>) -> (i32, i32, i32) {
    %0 = arith.index_cast %arg2 : i32 to index
    %1 = memref.load %arg3[%0] : memref<1xi32, #tpu.memory_space<smem>>
    %c0_i32 = arith.constant 0 : i32
    return %arg0, %1, %arg1 : i32, i32, i32
  }
  func.func @transform_1(%arg0: i32, %arg1: i32, %arg2: i32, %arg3: memref<1xi32, #tpu.memory_space<smem>>, %arg4: memref<1xi32, #tpu.memory_space<smem>>) -> (i32, i32, i32) {
    %0 = arith.index_cast %arg2 : i32 to index
    %1 = memref.load %arg4[%0] : memref<1xi32, #tpu.memory_space<smem>>
    %c1_i32 = arith.constant 1 : i32
    %2 = arith.addi %c1_i32, %arg1 : i32
    %c0_i32 = arith.constant 0 : i32
    return %arg0, %1, %2 : i32, i32, i32
  }
  func.func @transform_2(%arg0: i32, %arg1: i32, %arg2: i32, %arg3: memref<1xi32, #tpu.memory_space<smem>>, %arg4: memref<1xi32, #tpu.memory_space<smem>>) -> (i32, i32, i32) {
    %0 = arith.index_cast %arg2 : i32 to index
    %1 = memref.load %arg4[%0] : memref<1xi32, #tpu.memory_space<smem>>
    %c0_i32 = arith.constant 0 : i32
    return %arg0, %1, %arg1 : i32, i32, i32
  }
  func.func @transform_3(%arg0: i32, %arg1: i32, %arg2: i32, %arg3: memref<1xi32, #tpu.memory_space<smem>>, %arg4: memref<1xi32, #tpu.memory_space<smem>>) -> (i32, i32, i32) {
    %0 = arith.index_cast %arg2 : i32 to index
    %1 = memref.load %arg3[%0] : memref<1xi32, #tpu.memory_space<smem>>
    %c0_i32 = arith.constant 0 : i32
    return %arg0, %1, %arg1 : i32, i32, i32
  }
}

</mosaic_0001>

<llo_original>
// kernel: tpu_custom_call.1
$region0: #{tpu_custom_call.1}
  #allocation0 [shape = 'u32[]', space=smem, size = 0x4, offset = 0x4, fixed_abs, tag = 'smem constant byte address 0x4 - core index']
  #allocation1 [shape = 'u32[72,128]{1,0:T(1,128)}', space=vmem, size = 0x9000, scoped, tag = 'internal scratch']
  #allocation2 [shape = 'f32[4,8,1]{2,1,0:T(8,128)}', space=vmem, size = 0x4000, scoped, tag = 'scratch operand']
  #allocation3 [shape = 'f32[4,8,1]{2,1,0:T(8,128)}', space=vmem, size = 0x4000, scoped, tag = 'scratch operand']
  #allocation4 [shape = 'f32[4,8,32]{2,1,0:T(8,128)}', space=vmem, size = 0x4000, scoped, tag = 'scratch operand']
  #allocation5 [shape = 's32[1]{0}', space=sflag, size = 0x4, scoped, tag = 'scoped memory for tpu_custom_call.1']
  #allocation6 [shape = 's32[1]{0:T(128)S(6)}', space=smem, size = 0x200, scoped, tag = 'prefetched SMEM operand 0']
  #allocation7 [shape = 's32[1]{0:T(128)S(6)}', space=smem, size = 0x200, scoped, tag = 'prefetched SMEM operand 1']
  %s0 = inlined_call_operand.<no memory space> [shape: s32[1], index: 0, kind: input, shape index: {}]
  %s1 = inlined_call_operand.<no memory space> [shape: s32[1], index: 1, kind: input, shape index: {}]
  %s2 = inlined_call_operand.hbm [shape: f32[2,8,256], index: 2, kind: input, shape index: {}]
  %s3 = inlined_call_operand.hbm [shape: f32[2,8,256], index: 3, kind: input, shape index: {}]
  %s4 = inlined_call_operand.hbm [shape: f32[2,8,128], index: 4, kind: input, shape index: {}]
  %s5 = inlined_call_operand.hbm [shape: f32[2,8,128], index: 5, kind: output, shape index: {}]
  %s6 = sld [smem:[#allocation0]]
  $region69: #{tpu_custom_call.1} parent=0
    _
  %s8 = ssub.s32 1, %s6
  %s9 = scalar_select 0, %s8, %s6
  %10 = sst [smem:[#allocation6]] %s0
  %11 = sst [smem:[#allocation7]] %s1
  $region1: #{tpu_custom_call.1} parent=0
    #allocation8 [shape = 'u8[8192]{0}', space=vmem, size = 0x2000, scoped, tag = 'input window, operand 2']
    #allocation9 [shape = 's32[2]{0}', space=sflag, size = 0x8, scoped, tag = 'scoped memory for tpu_custom_call.1']
    #allocation10 [shape = 's32[2]{0}', space=sflag, size = 0x8, scoped, tag = 'scoped memory for tpu_custom_call.1']
    #allocation11 [shape = 'u8[8192]{0}', space=vmem, size = 0x2000, scoped, tag = 'input window, operand 3']
    #allocation12 [shape = 's32[2]{0}', space=sflag, size = 0x8, scoped, tag = 'scoped memory for tpu_custom_call.1']
    #allocation13 [shape = 'u8[8192]{0}', space=vmem, size = 0x2000, scoped, tag = 'input window, operand 4']
    #allocation14 [shape = 'u8[8192]{0}', space=vmem, size = 0x2000, scoped, tag = 'output window, operand 0']
    %12 = vsyncpa [#allocation9], 0
    %s13 = scalar_lea.sflag [#allocation9], 1
    %14 = vsyncpa %s13, 0
    %15 = vsyncpa [#allocation12], 0
    %s16 = scalar_lea.sflag [#allocation12], 1
    %17 = vsyncpa %s16, 0
    %18 = vsyncpa [#allocation10], 0
    %s19 = scalar_lea.sflag [#allocation10], 1
    %20 = vsyncpa %s19, 0
    loop: start=0, step=1, limit=4
    $region2: #{tpu_custom_call.1} parent=1 // loop_pre_header
      _
    $region3: #{tpu_custom_call.1} parent=1 // loop_header
      %s22 = sphi 0, %s26
      %p23 = scmp.ge.s32.totalorder %s22, 4
      %s29 = sphi 0, %s48
      %s30 = sphi 0, %s44
      %s31 = sphi 0, %s40
      %s32 = sphi 0, %s29
      %s33 = sphi 0, %s30
      %s34 = sphi 0, %s31
      %s35 = sphi 0, %s32
      %s36 = sphi 0, %s33
      %s37 = sphi 0, %s34
      %s57 = sphi 0, %s59
      %s60 = sphi 0, %s57
      %s61 = sphi 0, %s60
      %s77 = sphi 0, %s61
      %s91 = sphi 0, %s93
      %s94 = sphi 0, %s91
      %s95 = sphi 0, %s94
      %s111 = sphi 0, %s95
      %s123 = sphi 0, %s125
      %s126 = sphi 0, %s123
      %s127 = sphi 0, %s126
      %s143 = sphi 0, %s127
      %s155 = sphi 0, %s157
      %s158 = sphi 0, %s155
      %s159 = sphi 0, %s158
      %s175 = sphi 0, %s159
    $region4: #{tpu_custom_call.1} parent=1 // loop_header_branch
      %25 = sbr.rel (%p23) target = $region8
    $region5: #{tpu_custom_call.1} parent=1 // loop_body
      %s27 = ssub.s32 %s22, 1
      %s28 = ssub.s32 %s22, 2
      %s38 = sadd.s32 1, %s31
      %p39 = scmp.ge.s32.totalorder %s38, 1
      %s40 = scalar_select %p39, 0, %s38
      %s41 = sadd.s32 1, %s30
      %s42 = scalar_select %p39, %s41, %s30
      %p43 = scmp.ge.s32.totalorder %s42, 1
      %s44 = scalar_select %p43, 0, %s42
      %s45 = sadd.s32 1, %s29
      %s46 = scalar_select %p43, %s45, %s29
      %p47 = scmp.ge.s32.totalorder %s46, 2
      %s48 = scalar_select %p47, 0, %s46
      %s49 = sld [smem:[#allocation6 + %s31]]
      %s50 = sld [smem:[#allocation6 + %s40]]
      %s51 = ssub.s32 %s29, %s48
      %s52 = ssub.s32 %s49, %s50
      %s53 = sor.u32 %s51, %s52
      %s54 = ssub.s32 %s30, %s44
      %s55 = sor.u32 %s53, %s54
      %p56 = scmp.eq.s32.totalorder %s55, 0
      %s58 = sadd.s32 %s57, 1
      %s59 = scalar_select %p56, %s57, %s58
      %p62 = pneg %p56
      %p63 = scmp.eq.s32.totalorder %s22, 1
      %p64 = por %p62, %p63
      %p65 = scmp.ne.s32.totalorder %s57, %s60
      %p66 = scmp.eq.s32.totalorder %s22, 0
      %p67 = por %p65, %p66
      %p68 = scmp.ne.s32.totalorder %s57, %s60
      %p69 = scmp.eq.s32.totalorder %s27, 1
      %p70 = por %p68, %p69
      %p71 = scmp.ne.s32.totalorder %s60, %s61
      %p72 = scmp.eq.s32.totalorder %s27, 0
      %p73 = por %p71, %p72
      %p74 = scmp.ne.s32.totalorder %s60, %s61
      %p75 = scmp.eq.s32.totalorder %s28, 1
      %p76 = por %p74, %p75
      %p78 = scmp.ne.s32.totalorder %s61, %s77
      %p79 = scmp.eq.s32.totalorder %s28, 0
      %p80 = por %p78, %p79
      %s81 = sld [smem:[#allocation7 + %s31]]
      %s82 = sadd.s32 %s30, 1
      %s83 = sld [smem:[#allocation7 + %s40]]
      %s84 = sadd.s32 %s44, 1
      %s85 = ssub.s32 %s29, %s48
      %s86 = ssub.s32 %s81, %s83
      %s87 = sor.u32 %s85, %s86
      %s88 = ssub.s32 %s82, %s84
      %s89 = sor.u32 %s87, %s88
      %p90 = scmp.eq.s32.totalorder %s89, 0
      %s92 = sadd.s32 %s91, 1
      %s93 = scalar_select %p90, %s91, %s92
      %p96 = pneg %p90
      %p97 = scmp.eq.s32.totalorder %s22, 1
      %p98 = por %p96, %p97
      %p99 = scmp.ne.s32.totalorder %s91, %s94
      %p100 = scmp.eq.s32.totalorder %s22, 0
      %p101 = por %p99, %p100
      %p102 = scmp.ne.s32.totalorder %s91, %s94
      %p103 = scmp.eq.s32.totalorder %s27, 1
      %p104 = por %p102, %p103
      %p105 = scmp.ne.s32.totalorder %s94, %s95
      %p106 = scmp.eq.s32.totalorder %s27, 0
      %p107 = por %p105, %p106
      %p108 = scmp.ne.s32.totalorder %s94, %s95
      %p109 = scmp.eq.s32.totalorder %s28, 1
      %p110 = por %p108, %p109
      %p112 = scmp.ne.s32.totalorder %s95, %s111
      %p113 = scmp.eq.s32.totalorder %s28, 0
      %p114 = por %p112, %p113
      %s115 = sld [smem:[#allocation7 + %s31]]
      %s116 = sld [smem:[#allocation7 + %s40]]
      %s117 = ssub.s32 %s29, %s48
      %s118 = ssub.s32 %s115, %s116
      %s119 = sor.u32 %s117, %s118
      %s120 = ssub.s32 %s30, %s44
      %s121 = sor.u32 %s119, %s120
      %p122 = scmp.eq.s32.totalorder %s121, 0
      %s124 = sadd.s32 %s123, 1
      %s125 = scalar_select %p122, %s123, %s124
      %p128 = pneg %p122
      %p129 = scmp.eq.s32.totalorder %s22, 1
      %p130 = por %p128, %p129
      %p131 = scmp.ne.s32.totalorder %s123, %s126
      %p132 = scmp.eq.s32.totalorder %s22, 0
      %p133 = por %p131, %p132
      %p134 = scmp.ne.s32.totalorder %s123, %s126
      %p135 = scmp.eq.s32.totalorder %s27, 1
      %p136 = por %p134, %p135
      %p137 = scmp.ne.s32.totalorder %s126, %s127
      %p138 = scmp.eq.s32.totalorder %s27, 0
      %p139 = por %p137, %p138
      %p140 = scmp.ne.s32.totalorder %s126, %s127
      %p141 = scmp.eq.s32.totalorder %s28, 1
      %p142 = por %p140, %p141
      %p144 = scmp.ne.s32.totalorder %s127, %s143
      %p145 = scmp.eq.s32.totalorder %s28, 0
      %p146 = por %p144, %p145
      %s147 = sld [smem:[#allocation6 + %s31]]
      %s148 = sld [smem:[#allocation6 + %s40]]
      %s149 = ssub.s32 %s29, %s48
      %s150 = ssub.s32 %s147, %s148
      %s151 = sor.u32 %s149, %s150
      %s152 = ssub.s32 %s30, %s44
      %s153 = sor.u32 %s151, %s152
      %p154 = scmp.eq.s32.totalorder %s153, 0
      %s156 = sadd.s32 %s155, 1
      %s157 = scalar_select %p154, %s155, %s156
      %p160 = pneg %p154
      %p161 = scmp.eq.s32.totalorder %s22, 1
      %p162 = por %p160, %p161
      %p163 = scmp.ne.s32.totalorder %s155, %s158
      %p164 = scmp.eq.s32.totalorder %s22, 0
      %p165 = por %p163, %p164
      %p166 = scmp.ne.s32.totalorder %s155, %s158
      %p167 = scmp.eq.s32.totalorder %s27, 1
      %p168 = por %p166, %p167
      %p169 = scmp.ne.s32.totalorder %s158, %s159
      %p170 = scmp.eq.s32.totalorder %s27, 0
      %p171 = por %p169, %p170
      %p172 = scmp.ne.s32.totalorder %s158, %s159
      %p173 = scmp.eq.s32.totalorder %s28, 1
      %p174 = por %p172, %p173
      %p176 = scmp.ne.s32.totalorder %s159, %s175
      %p177 = scmp.eq.s32.totalorder %s28, 0
      %p178 = por %p176, %p177
      %p179 = scmp.le.s32.totalorder 1, %s22
      %p180 = scmp.lt.s32.totalorder %s22, 3
      %p181 = pnand %p179, %p180
      %p182 = pneg %p181
      // Predicated region
      $region9: #{tpu_custom_call.1} parent=5 // pred_check
        _
      $region10: #{tpu_custom_call.1} parent=5 // pred_check_branch
        %184 = sbr.rel (%p181) target = $region12
      $region11: #{tpu_custom_call.1} parent=5 // pred_region
        %s185 = ssub.s32 %s22, 1
      $region12: #{tpu_custom_call.1} parent=5 // pred_fallthru
        _
      %p186 = scmp.lt.s32.totalorder %s22, 2
      // Predicated region
      $region13: #{tpu_custom_call.1} parent=5 // pred_check
        %p187 = pneg %p186
      $region14: #{tpu_custom_call.1} parent=5 // pred_check_branch
        %189 = sbr.rel (%p187) target = $region16
      $region15: #{tpu_custom_call.1} parent=5 // pred_region
        // Predicated region
        $region17: #{tpu_custom_call.1} parent=15 // pred_check
          %p190 = pneg %p67
        $region18: #{tpu_custom_call.1} parent=15 // pred_check_branch
          %192 = sbr.rel (%p190) target = $region20
        $region19: #{tpu_custom_call.1} parent=15 // pred_region
          %s193 = sand.u32 %s57, 1
          %s194 = scalar_lea.sflag [#allocation9], %s193
          %s195 = sand.u32 %s57, 1
          %s196 = smul.addr %s195, 8
          %s197 = scalar_lea.vmem [#allocation8], %s196
          %s198 = sld [smem:[#allocation6 + %s31]]
          %200 = vsyncadd %s194, 0
          %s201 = smul.addr %s198, 2
          %s202 = sadd.s32 %s30, %s201
          %s203 = smul.addr %s29, 2
          %s204 = sadd.s32 %s202, %s203
          %s205 = smul.addr %s204, 8
          %s206 = scalar_lea.hbm %s2, %s205
          %s208 = sshll.u32 %s206, 4
          %s209 = int_to_ptr.hbm [resolvable:$true] %s208
          %s210 = sshll.u32 %s197, 4
          %s211 = int_to_ptr.vmem [resolvable:$true] %s210
          %213 = dma.hbm_to_vmem [thread:$0]  %s209, 128, %s211, %s194
        $region20: #{tpu_custom_call.1} parent=15 // pred_fallthru
          _
        // Predicated region
        $region21: #{tpu_custom_call.1} parent=15 // pred_check
          %p214 = pneg %p101
        $region22: #{tpu_custom_call.1} parent=15 // pred_check_branch
          %216 = sbr.rel (%p214) target = $region24
        $region23: #{tpu_custom_call.1} parent=15 // pred_region
          %s217 = sand.u32 %s22, 1
          %s218 = scalar_lea.sflag [#allocation12], %s217
          %s219 = sand.u32 %s91, 1
          %s220 = smul.addr %s219, 8
          %s221 = scalar_lea.vmem [#allocation11], %s220
          %s222 = sld [smem:[#allocation7 + %s31]]
          %s223 = sadd.s32 %s30, 1
          %225 = vsyncadd %s218, 0
          %s226 = smul.addr %s222, 2
          %s227 = sadd.s32 %s223, %s226
          %s228 = smul.addr %s29, 2
          %s229 = sadd.s32 %s227, %s228
          %s230 = smul.addr %s229, 8
          %s231 = scalar_lea.hbm %s3, %s230
          %s233 = sshll.u32 %s231, 4
          %s234 = int_to_ptr.hbm [resolvable:$true] %s233
          %s235 = sshll.u32 %s221, 4
          %s236 = int_to_ptr.vmem [resolvable:$true] %s235
          %238 = dma.hbm_to_vmem [thread:$0]  %s234, 128, %s236, %s218
        $region24: #{tpu_custom_call.1} parent=15 // pred_fallthru
          _
        // Predicated region
        $region25: #{tpu_custom_call.1} parent=15 // pred_check
          %p239 = pneg %p133
        $region26: #{tpu_custom_call.1} parent=15 // pred_check_branch
          %241 = sbr.rel (%p239) target = $region28
        $region27: #{tpu_custom_call.1} parent=15 // pred_region
          %s242 = sand.u32 %s22, 1
          %s243 = scalar_lea.sflag [#allocation12], %s242
          %s244 = sand.u32 %s123, 1
          %s245 = smul.addr %s244, 8
          %s246 = scalar_lea.vmem [#allocation13], %s245
          %s247 = sld [smem:[#allocation7 + %s31]]
          %249 = vsyncadd %s243, 0
          %s250 = sadd.s32 %s30, %s247
          %s251 = sadd.s32 %s250, %s29
          %s252 = smul.addr %s251, 8
          %s253 = scalar_lea.hbm %s4, %s252
          %s255 = sshll.u32 %s253, 4
          %s256 = int_to_ptr.hbm [resolvable:$true] %s255
          %s257 = sshll.u32 %s246, 4
          %s258 = int_to_ptr.vmem [resolvable:$true] %s257
          %260 = dma.hbm_to_vmem [thread:$0]  %s256, 128, %s258, %s243
        $region28: #{tpu_custom_call.1} parent=15 // pred_fallthru
          _
      $region16: #{tpu_custom_call.1} parent=5 // pred_fallthru
        _
      %p261 = scmp.le.s32.totalorder 1, %s22
      %p262 = scmp.lt.s32.totalorder %s22, 3
      %p263 = pnand %p261, %p262
      %p264 = pneg %p263
      // Predicated region
      $region29: #{tpu_custom_call.1} parent=5 // pred_check
        _
      $region30: #{tpu_custom_call.1} parent=5 // pred_check_branch
        %266 = sbr.rel (%p263) target = $region32
      $region31: #{tpu_custom_call.1} parent=5 // pred_region
        %s267 = ssub.s32 %s22, 1
        %s268 = sand.u32 %s60, 1
        %s269 = scalar_lea.sflag [#allocation9], %s268
        %s270 = sand.u32 %s60, 1
        %s271 = smul.addr %s270, 8
        %s272 = scalar_lea.vmem [#allocation8], %s271
        // Predicated region
        $region33: #{tpu_custom_call.1} parent=31 // pred_check
          %p273 = pneg %p73
        $region34: #{tpu_custom_call.1} parent=31 // pred_check_branch
          %275 = sbr.rel (%p273) target = $region36
        $region35: #{tpu_custom_call.1} parent=31 // pred_region
          %277 = dma.done %s269, 128
        $region36: #{tpu_custom_call.1} parent=31 // pred_fallthru
          _
        %s278 = sand.u32 %s27, 1
        %s279 = scalar_lea.sflag [#allocation12], %s278
        %s280 = sand.u32 %s94, 1
        %s281 = smul.addr %s280, 8
        %s282 = scalar_lea.vmem [#allocation11], %s281
        // Predicated region
        $region37: #{tpu_custom_call.1} parent=31 // pred_check
          %p283 = pneg %p107
        $region38: #{tpu_custom_call.1} parent=31 // pred_check_branch
          %285 = sbr.rel (%p283) target = $region40
        $region39: #{tpu_custom_call.1} parent=31 // pred_region
          %287 = dma.done %s279, 128
        $region40: #{tpu_custom_call.1} parent=31 // pred_fallthru
          _
        %s288 = sand.u32 %s27, 1
        %s289 = scalar_lea.sflag [#allocation12], %s288
        %s290 = sand.u32 %s126, 1
        %s291 = smul.addr %s290, 8
        %s292 = scalar_lea.vmem [#allocation13], %s291
        // Predicated region
        $region41: #{tpu_custom_call.1} parent=31 // pred_check
          %p293 = pneg %p139
        $region42: #{tpu_custom_call.1} parent=31 // pred_check_branch
          %295 = sbr.rel (%p293) target = $region44
        $region43: #{tpu_custom_call.1} parent=31 // pred_region
          %297 = dma.done %s289, 128
        $region44: #{tpu_custom_call.1} parent=31 // pred_fallthru
          _
        %s298 = sand.u32 %s60, 1
        %s299 = scalar_lea.sflag [#allocation9], %s298
        %s300 = sand.u32 %s60, 1
        %s301 = smul.addr %s300, 8
        %s302 = scalar_lea.vmem [#allocation8], %s301
        %p303 = pneg %p73
        %p304 = pneg %p70
        %s305 = sand.u32 %s27, 1
        %s306 = scalar_lea.sflag [#allocation12], %s305
        %s307 = sand.u32 %s94, 1
        %s308 = smul.addr %s307, 8
        %s309 = scalar_lea.vmem [#allocation11], %s308
        %p310 = pneg %p107
        %p311 = pneg %p104
        %s312 = sand.u32 %s27, 1
        %s313 = scalar_lea.sflag [#allocation12], %s312
        %s314 = sand.u32 %s126, 1
        %s315 = smul.addr %s314, 8
        %s316 = scalar_lea.vmem [#allocation13], %s315
        %p317 = pneg %p139
        %p318 = pneg %p136
        %p319 = pneg %p171
        %p320 = pneg %p168
        %s321 = sand.u32 %s158, 1
        %s322 = scalar_lea.sflag [#allocation10], %s321
        %s323 = sand.u32 %s158, 1
        %s324 = smul.addr %s323, 8
        %s325 = scalar_lea.vmem [#allocation14], %s324
        %s326 = sld [smem:[#allocation6 + %s34]]
        %s327 = sld [smem:[#allocation7 + %s34]]
        %s328 = sadd.s32 %s33, 1
        %s329 = sld [smem:[#allocation7 + %s34]]
        %s330 = sld [smem:[#allocation6 + %s34]]
        %s331 = sld [smem:[#allocation6 + %s34]]
        %s332 = sld [smem:[#allocation7 + %s34]]
        %p333 = scmp.eq.s32.totalorder %s332, 0
        // Predicated region
        $region45: #{tpu_custom_call.1} parent=31 // pred_check
          %p334 = pneg %p333
        $region46: #{tpu_custom_call.1} parent=31 // pred_check_branch
          %336 = sbr.rel (%p334) target = $region48
        $region47: #{tpu_custom_call.1} parent=31 // pred_region
          %vm337 = vcmask 7168
          %338 = vst.msk [vmem:[#allocation2] sm:$0xff] %vm337, -inf
          %339 = vst.msk [vmem:[#allocation2 + $0x8] sm:$0xff] %vm337, -inf
          %340 = vst.msk [vmem:[#allocation2 + $0x10] sm:$0xff] %vm337, -inf
          %341 = vst.msk [vmem:[#allocation2 + $0x18] sm:$0xff] %vm337, -inf
          %342 = vst.msk [vmem:[#allocation3] sm:$0xff] %vm337, 0.0
          %343 = vst.msk [vmem:[#allocation3 + $0x8] sm:$0xff] %vm337, 0.0
          %344 = vst.msk [vmem:[#allocation3 + $0x10] sm:$0xff] %vm337, 0.0
          %345 = vst.msk [vmem:[#allocation3 + $0x18] sm:$0xff] %vm337, 0.0
          %vm346 = vcmask 261120
          %347 = vst.msk [vmem:[#allocation4] sm:$0xff] %vm346, 0.0
          %348 = vst.msk [vmem:[#allocation4 + $0x8] sm:$0xff] %vm346, 0.0
          %349 = vst.msk [vmem:[#allocation4 + $0x10] sm:$0xff] %vm346, 0.0
          %350 = vst.msk [vmem:[#allocation4 + $0x18] sm:$0xff] %vm346, 0.0
        $region48: #{tpu_custom_call.1} parent=31 // pred_fallthru
          _
        %p351 = scmp.lt.s32.totalorder %s332, %s331
        // Predicated region
        $region49: #{tpu_custom_call.1} parent=31 // pred_check
          %p352 = pneg %p351
        $region50: #{tpu_custom_call.1} parent=31 // pred_check_branch
          %354 = sbr.rel (%p352) target = $region52
        $region51: #{tpu_custom_call.1} parent=31 // pred_region
          %v355 = vld [vmem:[%s272] sm:$0xff]
          %v356 = vmul.f32 %v355, 0.17677669
          %v357 = vld [vmem:[%s282] sm:$0xff]
          %v358 = vld [vmem:[%s292] sm:$0xff]
          %vm359 = vcmask 261120
          %v361 = vsel %vm359, %v356, 0
          %v364 = vsel %vm359, %v357, 0
          %366 = vmatpush.xpose.msra.mxu0 0.0
          %367 = vmatpush.xpose.msra.mxu0 0.0
          %368 = vmatpush.xpose.msra.mxu0 0.0
          %369 = vmatpush.xpose.msra.mxu0 0.0
          %370 = vmatpush.xpose.msra.mxu0 0.0
          %371 = vmatpush.xpose.msra.mxu0 0.0
          %372 = vmatpush.xpose.msra.mxu0 0.0
          %373 = vmatpush.xpose.msra.mxu0 0.0
          %374 = vmatpush.xpose.msra.mxu0 0.0
          %375 = vmatpush.xpose.msra.mxu0 0.0
          %376 = vmatpush.xpose.msra.mxu0 0.0
          %377 = vmatpush.xpose.msra.mxu0 0.0
          %378 = vmatpush.xpose.msra.mxu0 0.0
          %379 = vmatpush.xpose.msra.mxu0 0.0
          %380 = vmatpush.xpose.msra.mxu0 0.0
          %381 = vmatpush.xpose.msra.mxu0 %v364
          %382 = vmatmul.f32.gmra.mxu0 %v361
          %v383 = vpop.f32.mrf.mxu0
          %v384 = vadd.f32 0.0, %v383
          %385 = vdwg.mxu0
          %v386 = vld [vmem:[#allocation2] sm:$0xff]
          %vm387 = vcmask 64512
          %v388 = vsel %vm387, %v384, -inf
          %389 = vmax.xlane.f32.xlu0 %v388
          %v390 = vpop.xlane.xlu0 %389
          %v391 = vmax.f32 %v386, %v390
          %v392 = vsub.f32 %v386, %v391
          %v393 = vmul.f32 %v392, 1.442695
          %v394 = vpow.pop %v393
          %396 = vset.pattern.permute.xlu0 0
          %397 = vperm.xlu0 %396, %v391
          %v398 = vpop.permute.xlu0 %397
          %v400 = vsub.f32 %v384, %v398
          %v401 = vmul.f32 %v400, 1.442695
          %v402 = vpow.pop %v401
          %v403 = vld [vmem:[#allocation3] sm:$0xff]
          %v404 = vmul.f32 %v394, %v403
          %v405 = vsel %vm387, %v402, 0.0
          %406 = vadd.xlane.f32.xlu0 %v405
          %v407 = vpop.xlane.xlu0 %406
          %v408 = vadd.f32 %v404, %v407
          %vm409 = vcmask 7168
          %410 = vst.msk [vmem:[#allocation3] sm:$0xff] %vm409, %v408
          %v411 = vld [vmem:[#allocation4] sm:$0xff]
          %413 = vset.pattern.permute.xlu0 0
          %414 = vperm.xlu0 %413, %v394
          %v415 = vpop.permute.xlu0 %414
          %v417 = vmul.f32 %v415, %v411
          %v419 = vsel %vm387, %v402, 0
          %421 = vmatpush.msra.mxu0 0.0
          %422 = vmatpush.msra.mxu0 0.0
          %423 = vmatpush.msra.mxu0 0.0
          %424 = vmatpush.msra.mxu0 0.0
          %425 = vmatpush.msra.mxu0 0.0
          %426 = vmatpush.msra.mxu0 0.0
          %427 = vmatpush.msra.mxu0 0.0
          %428 = vmatpush.msra.mxu0 0.0
          %429 = vmatpush.msra.mxu0 0.0
          %430 = vmatpush.msra.mxu0 0.0
          %431 = vmatpush.msra.mxu0 0.0
          %432 = vmatpush.msra.mxu0 0.0
          %433 = vmatpush.msra.mxu0 0.0
          %434 = vmatpush.msra.mxu0 0.0
          %435 = vmatpush.msra.mxu0 0.0
          %436 = vmatpush.msra.mxu0 %v358
          %437 = vmatmul.f32.gmra.mxu0 %v419
          %v438 = vpop.f32.mrf.mxu0
          %v439 = vadd.f32 0.0, %v438
          %440 = vdwg.mxu0
          %v441 = vadd.f32 %v417, %v439
          %442 = vst.msk [vmem:[#allocation4] sm:$0xff] %vm359, %v441
          %443 = vst.msk [vmem:[#allocation2] sm:$0xff] %vm409, %v391
          %v444 = vld [vmem:[%s272] sm:$0xff]
          %v445 = vmul.f32 %v444, 0.17677669
          %v446 = vld [vmem:[%s282] sm:$0xff]
          %v447 = vld [vmem:[%s292] sm:$0xff]
          %449 = vrot.lane.b32.xlu0 %v445, 96
          %v450 = vpop.permute.xlu0 %449
          %452 = vrot.lane.b32.xlu0 %v446, 96
          %v453 = vpop.permute.xlu0 %452
          %v454 = vsel %vm359, %v450, 0
          %v456 = vsel %vm359, %v453, 0
          %458 = vmatpush.xpose.msra.mxu0 0.0
          %459 = vmatpush.xpose.msra.mxu0 0.0
          %460 = vmatpush.xpose.msra.mxu0 0.0
          %461 = vmatpush.xpose.msra.mxu0 0.0
          %462 = vmatpush.xpose.msra.mxu0 0.0
          %463 = vmatpush.xpose.msra.mxu0 0.0
          %464 = vmatpush.xpose.msra.mxu0 0.0
          %465 = vmatpush.xpose.msra.mxu0 0.0
          %466 = vmatpush.xpose.msra.mxu0 0.0
          %467 = vmatpush.xpose.msra.mxu0 0.0
          %468 = vmatpush.xpose.msra.mxu0 0.0
          %469 = vmatpush.xpose.msra.mxu0 0.0
          %470 = vmatpush.xpose.msra.mxu0 0.0
          %471 = vmatpush.xpose.msra.mxu0 0.0
          %472 = vmatpush.xpose.msra.mxu0 0.0
          %473 = vmatpush.xpose.msra.mxu0 %v456
          %474 = vmatmul.f32.gmra.mxu0 %v454
          %v475 = vpop.f32.mrf.mxu0
          %v476 = vadd.f32 0.0, %v475
          %477 = vdwg.mxu0
          %s478 = scalar_lea.vmem [#allocation2], 8
          %v479 = vld [vmem:[%s478] sm:$0xff]
          %v480 = vsel %vm387, %v476, -inf
          %481 = vmax.xlane.f32.xlu0 %v480
          %v482 = vpop.xlane.xlu0 %481
          %v483 = vmax.f32 %v479, %v482
          %v484 = vsub.f32 %v479, %v483
          %v485 = vmul.f32 %v484, 1.442695
          %v486 = vpow.pop %v485
          %488 = vset.pattern.permute.xlu0 0
          %489 = vperm.xlu0 %488, %v483
          %v490 = vpop.permute.xlu0 %489
          %v492 = vsub.f32 %v476, %v490
          %v493 = vmul.f32 %v492, 1.442695
          %v494 = vpow.pop %v493
          %s495 = scalar_lea.vmem [#allocation3], 8
          %v496 = vld [vmem:[%s495] sm:$0xff]
          %v497 = vmul.f32 %v486, %v496
          %v498 = vsel %vm387, %v494, 0.0
          %499 = vadd.xlane.f32.xlu0 %v498
          %v500 = vpop.xlane.xlu0 %499
          %v501 = vadd.f32 %v497, %v500
          %502 = vst.msk [vmem:[%s495] sm:$0xff] %vm409, %v501
          %s503 = scalar_lea.vmem [#allocation4], 8
          %v504 = vld [vmem:[%s503] sm:$0xff]
          %506 = vset.pattern.permute.xlu0 0
          %507 = vperm.xlu0 %506, %v486
          %v508 = vpop.permute.xlu0 %507
          %v510 = vmul.f32 %v508, %v504
          %512 = vrot.lane.b32.xlu0 %v447, 96
          %v513 = vpop.permute.xlu0 %512
          %v516 = vsel %vm387, %v494, 0
          %518 = vmatpush.msra.mxu0 0.0
          %519 = vmatpush.msra.mxu0 0.0
          %520 = vmatpush.msra.mxu0 0.0
          %521 = vmatpush.msra.mxu0 0.0
          %522 = vmatpush.msra.mxu0 0.0
          %523 = vmatpush.msra.mxu0 0.0
          %524 = vmatpush.msra.mxu0 0.0
          %525 = vmatpush.msra.mxu0 0.0
          %526 = vmatpush.msra.mxu0 0.0
          %527 = vmatpush.msra.mxu0 0.0
          %528 = vmatpush.msra.mxu0 0.0
          %529 = vmatpush.msra.mxu0 0.0
          %530 = vmatpush.msra.mxu0 0.0
          %531 = vmatpush.msra.mxu0 0.0
          %532 = vmatpush.msra.mxu0 0.0
          %533 = vmatpush.msra.mxu0 %v513
          %534 = vmatmul.f32.gmra.mxu0 %v516
          %v535 = vpop.f32.mrf.mxu0
          %v536 = vadd.f32 0.0, %v535
          %537 = vdwg.mxu0
          %v538 = vadd.f32 %v510, %v536
          %539 = vst.msk [vmem:[%s503] sm:$0xff] %vm359, %v538
          %540 = vst.msk [vmem:[%s478] sm:$0xff] %vm409, %v483
          %v541 = vld [vmem:[%s272] sm:$0xff]
          %v542 = vmul.f32 %v541, 0.17677669
          %v543 = vld [vmem:[%s282] sm:$0xff]
          %v544 = vld [vmem:[%s292] sm:$0xff]
          %546 = vrot.lane.b32.xlu0 %v542, 64
          %v547 = vpop.permute.xlu0 %546
          %549 = vrot.lane.b32.xlu0 %v543, 64
          %v550 = vpop.permute.xlu0 %549
          %v551 = vsel %vm359, %v547, 0
          %v553 = vsel %vm359, %v550, 0
          %555 = vmatpush.xpose.msra.mxu0 0.0
          %556 = vmatpush.xpose.msra.mxu0 0.0
          %557 = vmatpush.xpose.msra.mxu0 0.0
          %558 = vmatpush.xpose.msra.mxu0 0.0
          %559 = vmatpush.xpose.msra.mxu0 0.0
          %560 = vmatpush.xpose.msra.mxu0 0.0
          %561 = vmatpush.xpose.msra.mxu0 0.0
          %562 = vmatpush.xpose.msra.mxu0 0.0
          %563 = vmatpush.xpose.msra.mxu0 0.0
          %564 = vmatpush.xpose.msra.mxu0 0.0
          %565 = vmatpush.xpose.msra.mxu0 0.0
          %566 = vmatpush.xpose.msra.mxu0 0.0
          %567 = vmatpush.xpose.msra.mxu0 0.0
          %568 = vmatpush.xpose.msra.mxu0 0.0
          %569 = vmatpush.xpose.msra.mxu0 0.0
          %570 = vmatpush.xpose.msra.mxu0 %v553
          %571 = vmatmul.f32.gmra.mxu0 %v551
          %v572 = vpop.f32.mrf.mxu0
          %v573 = vadd.f32 0.0, %v572
          %574 = vdwg.mxu0
          %s575 = scalar_lea.vmem [#allocation2], 16
          %v576 = vld [vmem:[%s575] sm:$0xff]
          %v577 = vsel %vm387, %v573, -inf
          %578 = vmax.xlane.f32.xlu0 %v577
          %v579 = vpop.xlane.xlu0 %578
          %v580 = vmax.f32 %v576, %v579
          %v581 = vsub.f32 %v576, %v580
          %v582 = vmul.f32 %v581, 1.442695
          %v583 = vpow.pop %v582
          %585 = vset.pattern.permute.xlu0 0
          %586 = vperm.xlu0 %585, %v580
          %v587 = vpop.permute.xlu0 %586
          %v589 = vsub.f32 %v573, %v587
          %v590 = vmul.f32 %v589, 1.442695
          %v591 = vpow.pop %v590
          %s592 = scalar_lea.vmem [#allocation3], 16
          %v593 = vld [vmem:[%s592] sm:$0xff]
          %v594 = vmul.f32 %v583, %v593
          %v595 = vsel %vm387, %v591, 0.0
          %596 = vadd.xlane.f32.xlu0 %v595
          %v597 = vpop.xlane.xlu0 %596
          %v598 = vadd.f32 %v594, %v597
          %599 = vst.msk [vmem:[%s592] sm:$0xff] %vm409, %v598
          %s600 = scalar_lea.vmem [#allocation4], 16
          %v601 = vld [vmem:[%s600] sm:$0xff]
          %603 = vset.pattern.permute.xlu0 0
          %604 = vperm.xlu0 %603, %v583
          %v605 = vpop.permute.xlu0 %604
          %v607 = vmul.f32 %v605, %v601
          %609 = vrot.lane.b32.xlu0 %v544, 64
          %v610 = vpop.permute.xlu0 %609
          %v613 = vsel %vm387, %v591, 0
          %615 = vmatpush.msra.mxu0 0.0
          %616 = vmatpush.msra.mxu0 0.0
          %617 = vmatpush.msra.mxu0 0.0
          %618 = vmatpush.msra.mxu0 0.0
          %619 = vmatpush.msra.mxu0 0.0
          %620 = vmatpush.msra.mxu0 0.0
          %621 = vmatpush.msra.mxu0 0.0
          %622 = vmatpush.msra.mxu0 0.0
          %623 = vmatpush.msra.mxu0 0.0
          %624 = vmatpush.msra.mxu0 0.0
          %625 = vmatpush.msra.mxu0 0.0
          %626 = vmatpush.msra.mxu0 0.0
          %627 = vmatpush.msra.mxu0 0.0
          %628 = vmatpush.msra.mxu0 0.0
          %629 = vmatpush.msra.mxu0 0.0
          %630 = vmatpush.msra.mxu0 %v610
          %631 = vmatmul.f32.gmra.mxu0 %v613
          %v632 = vpop.f32.mrf.mxu0
          %v633 = vadd.f32 0.0, %v632
          %634 = vdwg.mxu0
          %v635 = vadd.f32 %v607, %v633
          %636 = vst.msk [vmem:[%s600] sm:$0xff] %vm359, %v635
          %637 = vst.msk [vmem:[%s575] sm:$0xff] %vm409, %v580
          %v638 = vld [vmem:[%s272] sm:$0xff]
          %v639 = vmul.f32 %v638, 0.17677669
          %v640 = vld [vmem:[%s282] sm:$0xff]
          %v641 = vld [vmem:[%s292] sm:$0xff]
          %643 = vrot.lane.b32.xlu0 %v639, 32
          %v644 = vpop.permute.xlu0 %643
          %646 = vrot.lane.b32.xlu0 %v640, 32
          %v647 = vpop.permute.xlu0 %646
          %v648 = vsel %vm359, %v644, 0
          %v650 = vsel %vm359, %v647, 0
          %652 = vmatpush.xpose.msra.mxu0 0.0
          %653 = vmatpush.xpose.msra.mxu0 0.0
          %654 = vmatpush.xpose.msra.mxu0 0.0
          %655 = vmatpush.xpose.msra.mxu0 0.0
          %656 = vmatpush.xpose.msra.mxu0 0.0
          %657 = vmatpush.xpose.msra.mxu0 0.0
          %658 = vmatpush.xpose.msra.mxu0 0.0
          %659 = vmatpush.xpose.msra.mxu0 0.0
          %660 = vmatpush.xpose.msra.mxu0 0.0
          %661 = vmatpush.xpose.msra.mxu0 0.0
          %662 = vmatpush.xpose.msra.mxu0 0.0
          %663 = vmatpush.xpose.msra.mxu0 0.0
          %664 = vmatpush.xpose.msra.mxu0 0.0
          %665 = vmatpush.xpose.msra.mxu0 0.0
          %666 = vmatpush.xpose.msra.mxu0 0.0
          %667 = vmatpush.xpose.msra.mxu0 %v650
          %668 = vmatmul.f32.gmra.mxu0 %v648
          %v669 = vpop.f32.mrf.mxu0
          %v670 = vadd.f32 0.0, %v669
          %671 = vdwg.mxu0
          %s672 = scalar_lea.vmem [#allocation2], 24
          %v673 = vld [vmem:[%s672] sm:$0xff]
          %v674 = vsel %vm387, %v670, -inf
          %675 = vmax.xlane.f32.xlu0 %v674
          %v676 = vpop.xlane.xlu0 %675
          %v677 = vmax.f32 %v673, %v676
          %v678 = vsub.f32 %v673, %v677
          %v679 = vmul.f32 %v678, 1.442695
          %v680 = vpow.pop %v679
          %682 = vset.pattern.permute.xlu0 0
          %683 = vperm.xlu0 %682, %v677
          %v684 = vpop.permute.xlu0 %683
          %v686 = vsub.f32 %v670, %v684
          %v687 = vmul.f32 %v686, 1.442695
          %v688 = vpow.pop %v687
          %s689 = scalar_lea.vmem [#allocation3], 24
          %v690 = vld [vmem:[%s689] sm:$0xff]
          %v691 = vmul.f32 %v680, %v690
          %v692 = vsel %vm387, %v688, 0.0
          %693 = vadd.xlane.f32.xlu0 %v692
          %v694 = vpop.xlane.xlu0 %693
          %v695 = vadd.f32 %v691, %v694
          %696 = vst.msk [vmem:[%s689] sm:$0xff] %vm409, %v695
          %s697 = scalar_lea.vmem [#allocation4], 24
          %v698 = vld [vmem:[%s697] sm:$0xff]
          %700 = vset.pattern.permute.xlu0 0
          %701 = vperm.xlu0 %700, %v680
          %v702 = vpop.permute.xlu0 %701
          %v704 = vmul.f32 %v702, %v698
          %706 = vrot.lane.b32.xlu0 %v641, 32
          %v707 = vpop.permute.xlu0 %706
          %v710 = vsel %vm387, %v688, 0
          %712 = vmatpush.msra.mxu0 0.0
          %713 = vmatpush.msra.mxu0 0.0
          %714 = vmatpush.msra.mxu0 0.0
          %715 = vmatpush.msra.mxu0 0.0
          %716 = vmatpush.msra.mxu0 0.0
          %717 = vmatpush.msra.mxu0 0.0
          %718 = vmatpush.msra.mxu0 0.0
          %719 = vmatpush.msra.mxu0 0.0
          %720 = vmatpush.msra.mxu0 0.0
          %721 = vmatpush.msra.mxu0 0.0
          %722 = vmatpush.msra.mxu0 0.0
          %723 = vmatpush.msra.mxu0 0.0
          %724 = vmatpush.msra.mxu0 0.0
          %725 = vmatpush.msra.mxu0 0.0
          %726 = vmatpush.msra.mxu0 0.0
          %727 = vmatpush.msra.mxu0 %v707
          %728 = vmatmul.f32.gmra.mxu0 %v710
          %v729 = vpop.f32.mrf.mxu0
          %v730 = vadd.f32 0.0, %v729
          %731 = vdwg.mxu0
          %v732 = vadd.f32 %v704, %v730
          %733 = vst.msk [vmem:[%s697] sm:$0xff] %vm359, %v732
          %734 = vst.msk [vmem:[%s672] sm:$0xff] %vm409, %v677
        $region52: #{tpu_custom_call.1} parent=31 // pred_fallthru
          _
        %p735 = scmp.eq.s32.totalorder %s332, %s331
        // Predicated region
        $region53: #{tpu_custom_call.1} parent=31 // pred_check
          %p736 = pneg %p735
        $region54: #{tpu_custom_call.1} parent=31 // pred_check_branch
          %738 = sbr.rel (%p736) target = $region56
        $region55: #{tpu_custom_call.1} parent=31 // pred_region
          %v739 = vld [vmem:[%s272] sm:$0xff]
          %v740 = vmul.f32 %v739, 0.17677669
          %v741 = vld [vmem:[%s282] sm:$0xff]
          %v742 = vld [vmem:[%s292] sm:$0xff]
          %v743 = vlaneseq
          %v744 = vshrl.u32 %v743, 7
          %v745 = vlaneseq
          %v746 = vand.u32 %v745, 127
          %vm747 = vcmp.gt.s32.totalorder %v746, %v744
          %v748 = vsel %vm747, -10000.0, 0.0
          %vm749 = vcmask 261120
          %v751 = vsel %vm749, %v740, 0
          %v754 = vsel %vm749, %v741, 0
          %756 = vmatpush.xpose.msra.mxu0 0.0
          %757 = vmatpush.xpose.msra.mxu0 0.0
          %758 = vmatpush.xpose.msra.mxu0 0.0
          %759 = vmatpush.xpose.msra.mxu0 0.0
          %760 = vmatpush.xpose.msra.mxu0 0.0
          %761 = vmatpush.xpose.msra.mxu0 0.0
          %762 = vmatpush.xpose.msra.mxu0 0.0
          %763 = vmatpush.xpose.msra.mxu0 0.0
          %764 = vmatpush.xpose.msra.mxu0 0.0
          %765 = vmatpush.xpose.msra.mxu0 0.0
          %766 = vmatpush.xpose.msra.mxu0 0.0
          %767 = vmatpush.xpose.msra.mxu0 0.0
          %768 = vmatpush.xpose.msra.mxu0 0.0
          %769 = vmatpush.xpose.msra.mxu0 0.0
          %770 = vmatpush.xpose.msra.mxu0 0.0
          %771 = vmatpush.xpose.msra.mxu0 %v754
          %772 = vmatmul.f32.gmra.mxu0 %v751
          %v773 = vpop.f32.mrf.mxu0
          %v774 = vadd.f32 %v748, %v773
          %775 = vdwg.mxu0
          %v776 = vld [vmem:[#allocation2] sm:$0xff]
          %vm777 = vcmask 64512
          %v778 = vsel %vm777, %v774, -inf
          %779 = vmax.xlane.f32.xlu0 %v778
          %v780 = vpop.xlane.xlu0 %779
          %v781 = vmax.f32 %v776, %v780
          %v782 = vsub.f32 %v776, %v781
          %v783 = vmul.f32 %v782, 1.442695
          %v784 = vpow.pop %v783
          %786 = vset.pattern.permute.xlu0 0
          %787 = vperm.xlu0 %786, %v781
          %v788 = vpop.permute.xlu0 %787
          %v790 = vsub.f32 %v774, %v788
          %v791 = vmul.f32 %v790, 1.442695
          %v792 = vpow.pop %v791
          %v793 = vld [vmem:[#allocation3] sm:$0xff]
          %v794 = vmul.f32 %v784, %v793
          %v795 = vsel %vm777, %v792, 0.0
          %796 = vadd.xlane.f32.xlu0 %v795
          %v797 = vpop.xlane.xlu0 %796
          %v798 = vadd.f32 %v794, %v797
          %vm799 = vcmask 7168
          %800 = vst.msk [vmem:[#allocation3] sm:$0xff] %vm799, %v798
          %v801 = vld [vmem:[#allocation4] sm:$0xff]
          %803 = vset.pattern.permute.xlu0 0
          %804 = vperm.xlu0 %803, %v784
          %v805 = vpop.permute.xlu0 %804
          %v807 = vmul.f32 %v805, %v801
          %v809 = vsel %vm777, %v792, 0
          %811 = vmatpush.msra.mxu0 0.0
          %812 = vmatpush.msra.mxu0 0.0
          %813 = vmatpush.msra.mxu0 0.0
          %814 = vmatpush.msra.mxu0 0.0
          %815 = vmatpush.msra.mxu0 0.0
          %816 = vmatpush.msra.mxu0 0.0
          %817 = vmatpush.msra.mxu0 0.0
          %818 = vmatpush.msra.mxu0 0.0
          %819 = vmatpush.msra.mxu0 0.0
          %820 = vmatpush.msra.mxu0 0.0
          %821 = vmatpush.msra.mxu0 0.0
          %822 = vmatpush.msra.mxu0 0.0
          %823 = vmatpush.msra.mxu0 0.0
          %824 = vmatpush.msra.mxu0 0.0
          %825 = vmatpush.msra.mxu0 0.0
          %826 = vmatpush.msra.mxu0 %v742
          %827 = vmatmul.f32.gmra.mxu0 %v809
          %v828 = vpop.f32.mrf.mxu0
          %v829 = vadd.f32 0.0, %v828
          %830 = vdwg.mxu0
          %v831 = vadd.f32 %v807, %v829
          %832 = vst.msk [vmem:[#allocation4] sm:$0xff] %vm749, %v831
          %833 = vst.msk [vmem:[#allocation2] sm:$0xff] %vm799, %v781
          %v834 = vld [vmem:[%s272] sm:$0xff]
          %v835 = vmul.f32 %v834, 0.17677669
          %v836 = vld [vmem:[%s282] sm:$0xff]
          %v837 = vld [vmem:[%s292] sm:$0xff]
          %839 = vrot.lane.b32.xlu0 %v835, 96
          %v840 = vpop.permute.xlu0 %839
          %842 = vrot.lane.b32.xlu0 %v836, 96
          %v843 = vpop.permute.xlu0 %842
          %v844 = vsel %vm749, %v840, 0
          %v846 = vsel %vm749, %v843, 0
          %848 = vmatpush.xpose.msra.mxu0 0.0
          %849 = vmatpush.xpose.msra.mxu0 0.0
          %850 = vmatpush.xpose.msra.mxu0 0.0
          %851 = vmatpush.xpose.msra.mxu0 0.0
          %852 = vmatpush.xpose.msra.mxu0 0.0
          %853 = vmatpush.xpose.msra.mxu0 0.0
          %854 = vmatpush.xpose.msra.mxu0 0.0
          %855 = vmatpush.xpose.msra.mxu0 0.0
          %856 = vmatpush.xpose.msra.mxu0 0.0
          %857 = vmatpush.xpose.msra.mxu0 0.0
          %858 = vmatpush.xpose.msra.mxu0 0.0
          %859 = vmatpush.xpose.msra.mxu0 0.0
          %860 = vmatpush.xpose.msra.mxu0 0.0
          %861 = vmatpush.xpose.msra.mxu0 0.0
          %862 = vmatpush.xpose.msra.mxu0 0.0
          %863 = vmatpush.xpose.msra.mxu0 %v846
          %864 = vmatmul.f32.gmra.mxu0 %v844
          %v865 = vpop.f32.mrf.mxu0
          %v866 = vadd.f32 %v748, %v865
          %867 = vdwg.mxu0
          %s868 = scalar_lea.vmem [#allocation2], 8
          %v869 = vld [vmem:[%s868] sm:$0xff]
          %v870 = vsel %vm777, %v866, -inf
          %871 = vmax.xlane.f32.xlu0 %v870
          %v872 = vpop.xlane.xlu0 %871
          %v873 = vmax.f32 %v869, %v872
          %v874 = vsub.f32 %v869, %v873
          %v875 = vmul.f32 %v874, 1.442695
          %v876 = vpow.pop %v875
          %878 = vset.pattern.permute.xlu0 0
          %879 = vperm.xlu0 %878, %v873
          %v880 = vpop.permute.xlu0 %879
          %v882 = vsub.f32 %v866, %v880
          %v883 = vmul.f32 %v882, 1.442695
          %v884 = vpow.pop %v883
          %s885 = scalar_lea.vmem [#allocation3], 8
          %v886 = vld [vmem:[%s885] sm:$0xff]
          %v887 = vmul.f32 %v876, %v886
          %v888 = vsel %vm777, %v884, 0.0
          %889 = vadd.xlane.f32.xlu0 %v888
          %v890 = vpop.xlane.xlu0 %889
          %v891 = vadd.f32 %v887, %v890
          %892 = vst.msk [vmem:[%s885] sm:$0xff] %vm799, %v891
          %s893 = scalar_lea.vmem [#allocation4], 8
          %v894 = vld [vmem:[%s893] sm:$0xff]
          %896 = vset.pattern.permute.xlu0 0
          %897 = vperm.xlu0 %896, %v876
          %v898 = vpop.permute.xlu0 %897
          %v900 = vmul.f32 %v898, %v894
          %902 = vrot.lane.b32.xlu0 %v837, 96
          %v903 = vpop.permute.xlu0 %902
          %v906 = vsel %vm777, %v884, 0
          %908 = vmatpush.msra.mxu0 0.0
          %909 = vmatpush.msra.mxu0 0.0
          %910 = vmatpush.msra.mxu0 0.0
          %911 = vmatpush.msra.mxu0 0.0
          %912 = vmatpush.msra.mxu0 0.0
          %913 = vmatpush.msra.mxu0 0.0
          %914 = vmatpush.msra.mxu0 0.0
          %915 = vmatpush.msra.mxu0 0.0
          %916 = vmatpush.msra.mxu0 0.0
          %917 = vmatpush.msra.mxu0 0.0
          %918 = vmatpush.msra.mxu0 0.0
          %919 = vmatpush.msra.mxu0 0.0
          %920 = vmatpush.msra.mxu0 0.0
          %921 = vmatpush.msra.mxu0 0.0
          %922 = vmatpush.msra.mxu0 0.0
          %923 = vmatpush.msra.mxu0 %v903
          %924 = vmatmul.f32.gmra.mxu0 %v906
          %v925 = vpop.f32.mrf.mxu0
          %v926 = vadd.f32 0.0, %v925
          %927 = vdwg.mxu0
          %v928 = vadd.f32 %v900, %v926
          %929 = vst.msk [vmem:[%s893] sm:$0xff] %vm749, %v928
          %930 = vst.msk [vmem:[%s868] sm:$0xff] %vm799, %v873
          %v931 = vld [vmem:[%s272] sm:$0xff]
          %v932 = vmul.f32 %v931, 0.17677669
          %v933 = vld [vmem:[%s282] sm:$0xff]
          %v934 = vld [vmem:[%s292] sm:$0xff]
          %936 = vrot.lane.b32.xlu0 %v932, 64
          %v937 = vpop.permute.xlu0 %936
          %939 = vrot.lane.b32.xlu0 %v933, 64
          %v940 = vpop.permute.xlu0 %939
          %v941 = vsel %vm749, %v937, 0
          %v943 = vsel %vm749, %v940, 0
          %945 = vmatpush.xpose.msra.mxu0 0.0
          %946 = vmatpush.xpose.msra.mxu0 0.0
          %947 = vmatpush.xpose.msra.mxu0 0.0
          %948 = vmatpush.xpose.msra.mxu0 0.0
          %949 = vmatpush.xpose.msra.mxu0 0.0
          %950 = vmatpush.xpose.msra.mxu0 0.0
          %951 = vmatpush.xpose.msra.mxu0 0.0
          %952 = vmatpush.xpose.msra.mxu0 0.0
          %953 = vmatpush.xpose.msra.mxu0 0.0
          %954 = vmatpush.xpose.msra.mxu0 0.0
          %955 = vmatpush.xpose.msra.mxu0 0.0
          %956 = vmatpush.xpose.msra.mxu0 0.0
          %957 = vmatpush.xpose.msra.mxu0 0.0
          %958 = vmatpush.xpose.msra.mxu0 0.0
          %959 = vmatpush.xpose.msra.mxu0 0.0
          %960 = vmatpush.xpose.msra.mxu0 %v943
          %961 = vmatmul.f32.gmra.mxu0 %v941
          %v962 = vpop.f32.mrf.mxu0
          %v963 = vadd.f32 %v748, %v962
          %964 = vdwg.mxu0
          %s965 = scalar_lea.vmem [#allocation2], 16
          %v966 = vld [vmem:[%s965] sm:$0xff]
          %v967 = vsel %vm777, %v963, -inf
          %968 = vmax.xlane.f32.xlu0 %v967
          %v969 = vpop.xlane.xlu0 %968
          %v970 = vmax.f32 %v966, %v969
          %v971 = vsub.f32 %v966, %v970
          %v972 = vmul.f32 %v971, 1.442695
          %v973 = vpow.pop %v972
          %975 = vset.pattern.permute.xlu0 0
          %976 = vperm.xlu0 %975, %v970
          %v977 = vpop.permute.xlu0 %976
          %v979 = vsub.f32 %v963, %v977
          %v980 = vmul.f32 %v979, 1.442695
          %v981 = vpow.pop %v980
          %s982 = scalar_lea.vmem [#allocation3], 16
          %v983 = vld [vmem:[%s982] sm:$0xff]
          %v984 = vmul.f32 %v973, %v983
          %v985 = vsel %vm777, %v981, 0.0
          %986 = vadd.xlane.f32.xlu0 %v985
          %v987 = vpop.xlane.xlu0 %986
          %v988 = vadd.f32 %v984, %v987
          %989 = vst.msk [vmem:[%s982] sm:$0xff] %vm799, %v988
          %s990 = scalar_lea.vmem [#allocation4], 16
          %v991 = vld [vmem:[%s990] sm:$0xff]
          %993 = vset.pattern.permute.xlu0 0
          %994 = vperm.xlu0 %993, %v973
          %v995 = vpop.permute.xlu0 %994
          %v997 = vmul.f32 %v995, %v991
          %999 = vrot.lane.b32.xlu0 %v934, 64
          %v1000 = vpop.permute.xlu0 %999
          %v1003 = vsel %vm777, %v981, 0
          %1005 = vmatpush.msra.mxu0 0.0
          %1006 = vmatpush.msra.mxu0 0.0
          %1007 = vmatpush.msra.mxu0 0.0
          %1008 = vmatpush.msra.mxu0 0.0
          %1009 = vmatpush.msra.mxu0 0.0
          %1010 = vmatpush.msra.mxu0 0.0
          %1011 = vmatpush.msra.mxu0 0.0
          %1012 = vmatpush.msra.mxu0 0.0
          %1013 = vmatpush.msra.mxu0 0.0
          %1014 = vmatpush.msra.mxu0 0.0
          %1015 = vmatpush.msra.mxu0 0.0
          %1016 = vmatpush.msra.mxu0 0.0
          %1017 = vmatpush.msra.mxu0 0.0
          %1018 = vmatpush.msra.mxu0 0.0
          %1019 = vmatpush.msra.mxu0 0.0
          %1020 = vmatpush.msra.mxu0 %v1000
          %1021 = vmatmul.f32.gmra.mxu0 %v1003
          %v1022 = vpop.f32.mrf.mxu0
          %v1023 = vadd.f32 0.0, %v1022
          %1024 = vdwg.mxu0
          %v1025 = vadd.f32 %v997, %v1023
          %1026 = vst.msk [vmem:[%s990] sm:$0xff] %vm749, %v1025
          %1027 = vst.msk [vmem:[%s965] sm:$0xff] %vm799, %v970
          %v1028 = vld [vmem:[%s272] sm:$0xff]
          %v1029 = vmul.f32 %v1028, 0.17677669
          %v1030 = vld [vmem:[%s282] sm:$0xff]
          %v1031 = vld [vmem:[%s292] sm:$0xff]
          %1033 = vrot.lane.b32.xlu0 %v1029, 32
          %v1034 = vpop.permute.xlu0 %1033
          %1036 = vrot.lane.b32.xlu0 %v1030, 32
          %v1037 = vpop.permute.xlu0 %1036
          %v1038 = vsel %vm749, %v1034, 0
          %v1040 = vsel %vm749, %v1037, 0
          %1042 = vmatpush.xpose.msra.mxu0 0.0
          %1043 = vmatpush.xpose.msra.mxu0 0.0
          %1044 = vmatpush.xpose.msra.mxu0 0.0
          %1045 = vmatpush.xpose.msra.mxu0 0.0
          %1046 = vmatpush.xpose.msra.mxu0 0.0
          %1047 = vmatpush.xpose.msra.mxu0 0.0
          %1048 = vmatpush.xpose.msra.mxu0 0.0
          %1049 = vmatpush.xpose.msra.mxu0 0.0
          %1050 = vmatpush.xpose.msra.mxu0 0.0
          %1051 = vmatpush.xpose.msra.mxu0 0.0
          %1052 = vmatpush.xpose.msra.mxu0 0.0
          %1053 = vmatpush.xpose.msra.mxu0 0.0
          %1054 = vmatpush.xpose.msra.mxu0 0.0
          %1055 = vmatpush.xpose.msra.mxu0 0.0
          %1056 = vmatpush.xpose.msra.mxu0 0.0
          %1057 = vmatpush.xpose.msra.mxu0 %v1040
          %1058 = vmatmul.f32.gmra.mxu0 %v1038
          %v1059 = vpop.f32.mrf.mxu0
          %v1060 = vadd.f32 %v748, %v1059
          %1061 = vdwg.mxu0
          %s1062 = scalar_lea.vmem [#allocation2], 24
          %v1063 = vld [vmem:[%s1062] sm:$0xff]
          %v1064 = vsel %vm777, %v1060, -inf
          %1065 = vmax.xlane.f32.xlu0 %v1064
          %v1066 = vpop.xlane.xlu0 %1065
          %v1067 = vmax.f32 %v1063, %v1066
          %v1068 = vsub.f32 %v1063, %v1067
          %v1069 = vmul.f32 %v1068, 1.442695
          %v1070 = vpow.pop %v1069
          %1072 = vset.pattern.permute.xlu0 0
          %1073 = vperm.xlu0 %1072, %v1067
          %v1074 = vpop.permute.xlu0 %1073
          %v1076 = vsub.f32 %v1060, %v1074
          %v1077 = vmul.f32 %v1076, 1.442695
          %v1078 = vpow.pop %v1077
          %s1079 = scalar_lea.vmem [#allocation3], 24
          %v1080 = vld [vmem:[%s1079] sm:$0xff]
          %v1081 = vmul.f32 %v1070, %v1080
          %v1082 = vsel %vm777, %v1078, 0.0
          %1083 = vadd.xlane.f32.xlu0 %v1082
          %v1084 = vpop.xlane.xlu0 %1083
          %v1085 = vadd.f32 %v1081, %v1084
          %1086 = vst.msk [vmem:[%s1079] sm:$0xff] %vm799, %v1085
          %s1087 = scalar_lea.vmem [#allocation4], 24
          %v1088 = vld [vmem:[%s1087] sm:$0xff]
          %1090 = vset.pattern.permute.xlu0 0
          %1091 = vperm.xlu0 %1090, %v1070
          %v1092 = vpop.permute.xlu0 %1091
          %v1094 = vmul.f32 %v1092, %v1088
          %1096 = vrot.lane.b32.xlu0 %v1031, 32
          %v1097 = vpop.permute.xlu0 %1096
          %v1100 = vsel %vm777, %v1078, 0
          %1102 = vmatpush.msra.mxu0 0.0
          %1103 = vmatpush.msra.mxu0 0.0
          %1104 = vmatpush.msra.mxu0 0.0
          %1105 = vmatpush.msra.mxu0 0.0
          %1106 = vmatpush.msra.mxu0 0.0
          %1107 = vmatpush.msra.mxu0 0.0
          %1108 = vmatpush.msra.mxu0 0.0
          %1109 = vmatpush.msra.mxu0 0.0
          %1110 = vmatpush.msra.mxu0 0.0
          %1111 = vmatpush.msra.mxu0 0.0
          %1112 = vmatpush.msra.mxu0 0.0
          %1113 = vmatpush.msra.mxu0 0.0
          %1114 = vmatpush.msra.mxu0 0.0
          %1115 = vmatpush.msra.mxu0 0.0
          %1116 = vmatpush.msra.mxu0 0.0
          %1117 = vmatpush.msra.mxu0 %v1097
          %1118 = vmatmul.f32.gmra.mxu0 %v1100
          %v1119 = vpop.f32.mrf.mxu0
          %v1120 = vadd.f32 0.0, %v1119
          %1121 = vdwg.mxu0
          %v1122 = vadd.f32 %v1094, %v1120
          %1123 = vst.msk [vmem:[%s1087] sm:$0xff] %vm749, %v1122
          %1124 = vst.msk [vmem:[%s1062] sm:$0xff] %vm799, %v1067
          %v1125 = vld [vmem:[#allocation3] sm:$0xff]
          %v1126 = vrcp.pop %v1125
          %v1127 = vmul.f32 %v1125, %v1126
          %v1128 = vsub.f32 2.0, %v1127
          %v1129 = vmul.f32 %v1126, %v1128
          %v1130 = vld [vmem:[#allocation4] sm:$0xff]
          %1132 = vset.pattern.permute.xlu0 0
          %1133 = vperm.xlu0 %1132, %v1129
          %v1134 = vpop.permute.xlu0 %1133
          %v1136 = vmul.f32 %v1130, %v1134
          %1137 = vst.msk [vmem:[%s325] sm:$0xff] %vm749, %v1136
          %v1138 = vld [vmem:[%s885] sm:$0xff]
          %v1139 = vrcp.pop %v1138
          %v1140 = vmul.f32 %v1138, %v1139
          %v1141 = vsub.f32 2.0, %v1140
          %v1142 = vmul.f32 %v1139, %v1141
          %v1143 = vld [vmem:[%s893] sm:$0xff]
          %1145 = vset.pattern.permute.xlu0 0
          %1146 = vperm.xlu0 %1145, %v1142
          %v1147 = vpop.permute.xlu0 %1146
          %v1149 = vmul.f32 %v1143, %v1147
          %1151 = vrot.lane.b32.xlu0 %v1149, 32
          %v1152 = vpop.permute.xlu0 %1151
          %vm1154 = vcmask 523520
          %1155 = vst.msk [vmem:[%s325] sm:$0xff] %vm1154, %v1152
          %v1156 = vld [vmem:[%s982] sm:$0xff]
          %v1157 = vrcp.pop %v1156
          %v1158 = vmul.f32 %v1156, %v1157
          %v1159 = vsub.f32 2.0, %v1158
          %v1160 = vmul.f32 %v1157, %v1159
          %v1161 = vld [vmem:[%s990] sm:$0xff]
          %1163 = vset.pattern.permute.xlu0 0
          %1164 = vperm.xlu0 %1163, %v1160
          %v1165 = vpop.permute.xlu0 %1164
          %v1167 = vmul.f32 %v1161, %v1165
          %1169 = vrot.lane.b32.xlu0 %v1167, 64
          %v1170 = vpop.permute.xlu0 %1169
          %vm1172 = vcmask 785920
          %1173 = vst.msk [vmem:[%s325] sm:$0xff] %vm1172, %v1170
          %v1174 = vld [vmem:[%s1079] sm:$0xff]
          %v1175 = vrcp.pop %v1174
          %v1176 = vmul.f32 %v1174, %v1175
          %v1177 = vsub.f32 2.0, %v1176
          %v1178 = vmul.f32 %v1175, %v1177
          %v1179 = vld [vmem:[%s1087] sm:$0xff]
          %1181 = vset.pattern.permute.xlu0 0
          %1182 = vperm.xlu0 %1181, %v1178
          %v1183 = vpop.permute.xlu0 %1182
          %v1185 = vmul.f32 %v1179, %v1183
          %1187 = vrot.lane.b32.xlu0 %v1185, 96
          %v1188 = vpop.permute.xlu0 %1187
          %vm1190 = vcmask 1048320
          %1191 = vst.msk [vmem:[%s325] sm:$0xff] %vm1190, %v1188
        $region56: #{tpu_custom_call.1} parent=31 // pred_fallthru
          _
        %s1192 = sand.u32 %s158, 1
        %s1193 = scalar_lea.sflag [#allocation10], %s1192
        %s1194 = sand.u32 %s158, 1
        %s1195 = smul.addr %s1194, 8
        %s1196 = scalar_lea.vmem [#allocation14], %s1195
        // Predicated region
        $region57: #{tpu_custom_call.1} parent=31 // pred_check
          %p1197 = pneg %p168
        $region58: #{tpu_custom_call.1} parent=31 // pred_check_branch
          %1199 = sbr.rel (%p1197) target = $region60
        $region59: #{tpu_custom_call.1} parent=31 // pred_region
          %s1200 = sld [smem:[#allocation6 + %s34]]
          %1202 = vsyncadd %s1193, 0
          %s1203 = sadd.s32 %s33, %s1200
          %s1204 = sadd.s32 %s1203, %s32
          %s1205 = smul.addr %s1204, 8
          %s1206 = scalar_lea.hbm %s5, %s1205
          %s1208 = sshll.u32 %s1196, 4
          %s1209 = int_to_ptr.vmem [resolvable:$true] %s1208
          %s1210 = sshll.u32 %s1206, 4
          %s1211 = int_to_ptr.hbm [resolvable:$true] %s1210
          %1213 = dma.vmem_to_hbm [thread:$0]  %s1209, 128, %s1211, %s1193
        $region60: #{tpu_custom_call.1} parent=31 // pred_fallthru
          _
      $region32: #{tpu_custom_call.1} parent=5 // pred_fallthru
        _
      %p1214 = scmp.le.s32.totalorder 2, %s22
      // Predicated region
      $region61: #{tpu_custom_call.1} parent=5 // pred_check
        %p1215 = pneg %p1214
      $region62: #{tpu_custom_call.1} parent=5 // pred_check_branch
        %1217 = sbr.rel (%p1215) target = $region64
      $region63: #{tpu_custom_call.1} parent=5 // pred_region
        %s1218 = ssub.s32 %s22, 2
        // Predicated region
        $region65: #{tpu_custom_call.1} parent=63 // pred_check
          %p1219 = pneg %p174
        $region66: #{tpu_custom_call.1} parent=63 // pred_check_branch
          %1221 = sbr.rel (%p1219) target = $region68
        $region67: #{tpu_custom_call.1} parent=63 // pred_region
          %s1222 = sand.u32 %s159, 1
          %s1223 = scalar_lea.sflag [#allocation10], %s1222
          %s1224 = sand.u32 %s159, 1
          %s1225 = smul.addr %s1224, 8
          %s1226 = scalar_lea.vmem [#allocation14], %s1225
          %1228 = dma.done %s1223, 128
        $region68: #{tpu_custom_call.1} parent=63 // pred_fallthru
          _
      $region64: #{tpu_custom_call.1} parent=5 // pred_fallthru
        _
    $region6: #{tpu_custom_call.1} parent=1 // loop_footer
      %s26 = sadd.s32 1, %s22
    $region7: #{tpu_custom_call.1} parent=1 // loop_footer_branch
      %21 = sbr.rel target = $region3
    $region8: #{tpu_custom_call.1} parent=1 // loop_exit
      _
    %1229 = vsyncpa [#allocation9], 1
    %s1230 = scalar_lea.sflag [#allocation9], 1
    %1231 = vsyncpa %s1230, 1
    %1232 = vsyncpa [#allocation12], 1
    %s1233 = scalar_lea.sflag [#allocation12], 1
    %1234 = vsyncpa %s1233, 1
    %1235 = vsyncpa [#allocation10], 1
    %s1236 = scalar_lea.sflag [#allocation10], 1
    %1237 = vsyncpa %s1236, 1

</llo_original>
